<compile_context>
chip_gen: v5e
topology: v5e:2x2
jax: 0.10.0
libtpu: 0.0.40
codegen_flags: <defaults>
</compile_context>

<pallas_src>
import jax
import jax.numpy as jnp
from jax.experimental import pallas as pl
from jax.experimental.pallas import tpu as pltpu


def _round_up(x, m):
    return ((x + m - 1) // m) * m


# ---------------------------------------------------------------------------
# Pallas kernel 1: fused reprojection-conv + decoder MLP
#   h = softplus([gf pf xf] @ (Wc @ W1) + (bc @ W1 + b1)) ;  o = h @ W2 + b2
# ---------------------------------------------------------------------------
def _point_mlp_kernel(gf_ref, pf_ref, xf_ref, wg_ref, wp_ref, wx_ref,
                      bf_ref, w2_ref, b2_ref, out_ref):
    h = jnp.dot(gf_ref[...], wg_ref[...], preferred_element_type=jnp.float32)
    h = h + jnp.dot(pf_ref[...], wp_ref[...], preferred_element_type=jnp.float32)
    h = h + jnp.dot(xf_ref[...], wx_ref[...], preferred_element_type=jnp.float32)
    h = jax.nn.softplus(h + bf_ref[...])
    o = jnp.dot(h, w2_ref[...], preferred_element_type=jnp.float32) + b2_ref[...]
    # lane 0 -> sigma (raw), lanes 1..3 -> rgb head: sigmoid(x)*(1+2e-3)-1e-3.
    act = jax.nn.sigmoid(o) * (1.0 + 2.0 * 0.001) - 0.001
    lane = jax.lax.broadcasted_iota(jnp.int32, o.shape, 1)
    out_ref[...] = jnp.where(lane == 0, o, act)          # single assembled store


def point_mlp(gfeat, pfeat, xfeat, params, tile_n=1024):
    """gfeat (N,134), pfeat (N,96), xfeat (N,96) -> (sigma (N,1), rgb (N,3))."""
    N, Cg = gfeat.shape
    Cp = pfeat.shape[1]
    Cx = xfeat.shape[1]

    # Offline fusion: no nonlinearity between the 1x1 conv and decoder layer 1.
    w1 = params["w1"]                                              # (32, 64)
    wf = jnp.dot(params["wc"], w1)                                 # (326, 64)
    bf = (jnp.dot(params["bc"], w1) + params["b1"]).reshape(1, 64)
    wg = wf[:Cg]
    wp = wf[Cg:Cg + Cp]
    wx = wf[Cg + Cp:Cg + Cp + Cx]
    w2 = params["w2"]
    b2 = params["b2"].reshape(1, 4)

    tile = min(tile_n, _round_up(N, 128))
    Npad = _round_up(N, tile)
    if Npad != N:
        padn = Npad - N
        gfeat = jnp.pad(gfeat, ((0, padn), (0, 0)))
        pfeat = jnp.pad(pfeat, ((0, padn), (0, 0)))
        xfeat = jnp.pad(xfeat, ((0, padn), (0, 0)))

    out = pl.pallas_call(
        _point_mlp_kernel,
        out_shape=jax.ShapeDtypeStruct((Npad, 4), jnp.float32),
        grid_spec=pltpu.PrefetchScalarGridSpec(
            num_scalar_prefetch=0,
            grid=(Npad // tile,),
            in_specs=[
                pl.BlockSpec((tile, Cg), lambda i: (i, 0)),
                pl.BlockSpec((tile, Cp), lambda i: (i, 0)),
                pl.BlockSpec((tile, Cx), lambda i: (i, 0)),
                pl.BlockSpec((Cg, 64), lambda i: (0, 0)),
                pl.BlockSpec((Cp, 64), lambda i: (0, 0)),
                pl.BlockSpec((Cx, 64), lambda i: (0, 0)),
                pl.BlockSpec((1, 64), lambda i: (0, 0)),
                pl.BlockSpec((64, 4), lambda i: (0, 0)),
                pl.BlockSpec((1, 4), lambda i: (0, 0)),
            ],
            out_specs=pl.BlockSpec((tile, 4), lambda i: (i, 0)),
        ),
        compiler_params=pltpu.CompilerParams(
            dimension_semantics=("parallel",),
            vmem_limit_bytes=32 * 1024 * 1024),
    )(gfeat.astype(jnp.float32), pfeat.astype(jnp.float32),
      xfeat.astype(jnp.float32), wg, wp, wx, bf, w2, b2)

    out = out[:N]
    return out[:, 0:1], out[:, 1:4]


# ---------------------------------------------------------------------------
# Pallas kernel 2: MipRayMarcher2  (rays on lanes, samples on sublanes)
# ---------------------------------------------------------------------------
def _ray_marcher_kernel(colors_ref, dens_ref, depths_ref,
                        rgb_ref, depth_ref, w_ref, trans_ref):
    colors = colors_ref[...]        # (3, S, T)
    dens = dens_ref[...]            # (S, T)
    depths = depths_ref[...]        # (S, T)

    deltas = depths[1:, :] - depths[:-1, :]                        # (S-1, T)
    colors_mid = 0.5 * (colors[:, :-1, :] + colors[:, 1:, :])      # (3, S-1, T)
    dens_mid = 0.5 * (dens[:-1, :] + dens[1:, :])                  # (S-1, T)
    depths_mid = 0.5 * (depths[:-1, :] + depths[1:, :])            # (S-1, T)

    # clamp_mode == 'softplus'
    dens_mid = jax.nn.softplus(dens_mid - 1.0)
    alpha = 1.0 - jnp.exp(-dens_mid * deltas)                      # (S-1, T)
    a = 1.0 - alpha + 1e-10

    # exclusive cumulative product along samples (short unrolled chain; S-1 <= 16)
    S1, T = alpha.shape
    running = jnp.ones((1, T), jnp.float32)
    trans_ref[0:1, :] = running
    for i in range(1, S1):
        running = running * a[i - 1:i, :]
        trans_ref[i:i + 1, :] = running
    transmittance = trans_ref[...]

    weights = alpha * transmittance                                # (S-1, T)

    comp_rgb = jnp.sum(weights[None, :, :] * colors_mid, axis=1)   # (3, T)
    w_total = jnp.sum(weights, axis=0, keepdims=True)              # (1, T)
    comp_depth = (jnp.sum(weights * depths_mid, axis=0, keepdims=True)
                  * pl.reciprocal(w_total, approx=True))
    comp_depth = jnp.where(jnp.isnan(comp_depth), jnp.inf, comp_depth)

    # white_back = False ; rescale rgb to [-1, 1]
    rgb_ref[...] = comp_rgb * 2.0 - 1.0
    depth_ref[...] = comp_depth
    w_ref[...] = weights


def ray_marcher(colors, densities, depths, tile_br=512):
    """colors (B,R,S,3), densities (B,R,S,1), depths (B,R,S,1)."""
    B, R, S, _ = colors.shape
    BR = B * R
    # rays -> lane axis
    c = jnp.transpose(colors.reshape(BR, S, 3), (2, 1, 0)).astype(jnp.float32)  # (3,S,BR)
    d = jnp.transpose(densities.reshape(BR, S), (1, 0)).astype(jnp.float32)     # (S,BR)
    z = jnp.transpose(depths.reshape(BR, S), (1, 0)).astype(jnp.float32)        # (S,BR)

    tile = min(tile_br, _round_up(BR, 128))
    BRp = _round_up(BR, tile)
    if BRp != BR:
        pad = BRp - BR
        c = jnp.pad(c, ((0, 0), (0, 0), (0, pad)))
        d = jnp.pad(d, ((0, 0), (0, pad)))
        z = jnp.pad(z, ((0, 0), (0, pad)))

    rgb_t, dep_t, w_t = pl.pallas_call(
        _ray_marcher_kernel,
        out_shape=(jax.ShapeDtypeStruct((3, BRp), jnp.float32),
                   jax.ShapeDtypeStruct((1, BRp), jnp.float32),
                   jax.ShapeDtypeStruct((S - 1, BRp), jnp.float32)),
        grid_spec=pltpu.PrefetchScalarGridSpec(
            num_scalar_prefetch=0,
            grid=(BRp // tile,),
            in_specs=[pl.BlockSpec((3, S, tile), lambda i: (0, 0, i)),
                      pl.BlockSpec((S, tile), lambda i: (0, i)),
                      pl.BlockSpec((S, tile), lambda i: (0, i))],
            out_specs=[pl.BlockSpec((3, tile), lambda i: (0, i)),
                       pl.BlockSpec((1, tile), lambda i: (0, i)),
                       pl.BlockSpec((S - 1, tile), lambda i: (0, i))],
            scratch_shapes=[pltpu.VMEM((S - 1, tile), jnp.float32)]),
        compiler_params=pltpu.CompilerParams(
            dimension_semantics=("parallel",),
            vmem_limit_bytes=32 * 1024 * 1024),
    )(c, d, z)

    rgb = jnp.transpose(rgb_t[:, :BR], (1, 0)).reshape(B, R, 3)
    dep = jnp.transpose(dep_t[:, :BR], (1, 0)).reshape(B, R, 1)
    w = jnp.transpose(w_t[:, :BR], (1, 0)).reshape(B, R, S - 1, 1)

    # global depth-range clamp (outside the kernel so it stays tile-invariant,
    # matching torch.clamp(depth, depths.min(), depths.max()))
    dep = jnp.clip(dep, jnp.min(depths), jnp.max(depths))
    return rgb, dep, w


# ---------------------------------------------------------------------------
# Plain-JAX glue (feature stand-ins, pts / masking, importance sampling)
# ---------------------------------------------------------------------------
def global_feature(params, coords):
    # TODO(synk): FeatureExtractor.global_feature is external/undefined; deterministic stand-in.
    return jnp.sin(coords @ params["Pg"] + params["bg"])            # (B, N, 134)


def point_level_feature(params, canon_pts):
    # TODO(synk): FeatureExtractor.point_level_F is external/undefined; deterministic stand-in.
    return jnp.sin(canon_pts @ params["Pp"] + params["bp"])         # (B, N, 96)


def pixel_align_feature(params, canon_pts):
    # TODO(synk): FeatureExtractor.pixel_align_F is external/undefined; deterministic stand-in.
    return jnp.cos(canon_pts @ params["Px"] + params["bx"])         # (B, N, 96)


def get_pts(input_data, sample_coordinates, sample_directions):
    R = input_data["params"]["R"]          # (3, 3)
    Th = input_data["params"]["Th"]        # (1, 1, 3)
    q = jnp.matmul(sample_coordinates - Th, R)
    qd = jnp.matmul(sample_directions, R)
    tar = jnp.matmul(input_data["vertices"] - Th, R)                # (1, V, 3)
    # knn_points K=1 via ||q||^2 + ||t||^2 - 2 q@t^T (MXU-friendly, no (N,V,3) tensor)
    tarb = jnp.broadcast_to(tar, (q.shape[0],) + tar.shape[1:])
    cross = jnp.einsum("bnc,bvc->bnv", q, tarb)
    d2 = (jnp.sum(q * q, axis=-1, keepdims=True)
          + jnp.sum(tarb * tarb, axis=-1)[:, None, :]
          - 2.0 * cross)
    dist = jnp.min(d2, axis=-1)                                     # (B, N)
    pts_mask = (dist < 0.05 ** 2).astype(jnp.int32)
    # TODO(synk): coarse_deform_target2c (SMPL LBS canonicalization) is external; identity used.
    canon_pts, canon_dirs = q, qd
    # NOTE: instead of torch dynamic boolean gather, all points are kept and the
    # mask is applied afterwards (densities := -80 where mask==0), which is
    # equivalent because the decoder is pointwise.
    return q, qd, canon_pts, canon_dirs, pts_mask


def run_model(params, gfeat, pfeat, xfeat):
    # combine_features (all three feature flags True) handled inside the kernel
    # as three partial matmuls -> no 326-channel concat is materialized.
    B, N, _ = gfeat.shape
    sigma, rgb = point_mlp(gfeat.reshape(B * N, -1),
                           pfeat.reshape(B * N, -1),
                           xfeat.reshape(B * N, -1), params)
    return sigma.reshape(B, N, 1), rgb.reshape(B, N, 3)


def sample_pdf(key, bins, weights, N_importance, eps=1e-5):
    N_rays, N_samples_ = weights.shape
    weights = weights + eps
    pdf = weights / jnp.sum(weights, axis=-1, keepdims=True)
    cdf = jnp.cumsum(pdf, axis=-1)
    cdf = jnp.concatenate([jnp.zeros_like(cdf[:, :1]), cdf], axis=-1)
    u = jax.random.uniform(key, (N_rays, N_importance), dtype=jnp.float32)
    inds = jax.vmap(lambda c, uu: jnp.searchsorted(c, uu, side="right"))(cdf, u)
    below = jnp.clip(inds - 1, 0, None)
    above = jnp.clip(inds, None, N_samples_)
    inds_sampled = jnp.stack([below, above], axis=-1).reshape(N_rays, 2 * N_importance)
    cdf_g = jnp.take_along_axis(cdf, inds_sampled, axis=1).reshape(N_rays, N_importance, 2)
    bins_g = jnp.take_along_axis(bins, inds_sampled, axis=1).reshape(N_rays, N_importance, 2)
    denom = cdf_g[..., 1] - cdf_g[..., 0]
    denom = jnp.where(denom < eps, 1.0, denom)
    samples = bins_g[..., 0] + (u - cdf_g[..., 0]) / denom * (bins_g[..., 1] - bins_g[..., 0])
    return samples


def sample_importance(key, z_vals, weights, N_importance):
    B, R, S, _ = z_vals.shape
    z = z_vals.reshape(B * R, S)
    w = weights.reshape(B * R, -1)                                   # (B*R, S-1)
    # max_pool1d(kernel=2, stride=1, padding=1)  (implicit -inf padding)
    w_pad = jnp.pad(w, ((0, 0), (1, 1)), constant_values=-jnp.inf)
    m = jnp.maximum(w_pad[:, :-1], w_pad[:, 1:])                     # (B*R, S)
    # avg_pool1d(kernel=2, stride=1)
    a = 0.5 * (m[:, :-1] + m[:, 1:])                                 # (B*R, S-1)
    w2 = a + 0.01
    z_mid = 0.5 * (z[:, :-1] + z[:, 1:])                             # (B*R, S-1)
    samples = sample_pdf(key, z_mid, w2[:, 1:-1], N_importance)
    return samples.reshape(B, R, N_importance, 1)


def unify_samples(d1, c1, s1, d2, c2, s2):
    all_depths = jnp.concatenate([d1, d2], axis=-2)
    all_colors = jnp.concatenate([c1, c2], axis=-2)
    all_densities = jnp.concatenate([s1, s2], axis=-2)
    idx = jnp.argsort(all_depths, axis=-2)
    all_depths = jnp.take_along_axis(all_depths, idx, axis=-2)
    all_colors = jnp.take_along_axis(
        all_colors, jnp.broadcast_to(idx, all_colors.shape), axis=-2)
    all_densities = jnp.take_along_axis(all_densities, idx, axis=-2)
    return all_depths, all_colors, all_densities


def renderer_forward(params, ray_origins, ray_directions, near, far,
                     input_data, rendering_options, rng_key):
    B, R_rays, _ = ray_origins.shape
    S = rendering_options["depth_resolution"]

    # sample_stratified (scalar near/far, no disparity sampling)
    z = jnp.linspace(near, far, S, dtype=jnp.float32)
    depths_coarse = jnp.broadcast_to(z.reshape(1, 1, S, 1), (B, R_rays, S, 1))

    sample_coordinates = (ray_origins[:, :, None, :]
                          + depths_coarse * ray_directions[:, :, None, :]).reshape(B, -1, 3)
    sample_directions = jnp.broadcast_to(
        ray_directions[:, :, None, :], (B, R_rays, S, 3)).reshape(B, -1, 3)

    _, _, canon_pts, _, pts_mask = get_pts(input_data, sample_coordinates, sample_directions)

    gfeat = global_feature(params, sample_coordinates)
    pfeat = point_level_feature(params, canon_pts)
    xfeat = pixel_align_feature(params, canon_pts)
    sigma, rgb = run_model(params, gfeat, pfeat, xfeat)

    mask3 = (pts_mask[..., None] == 1)
    colors_coarse = jnp.where(mask3, rgb, 0.0).reshape(B, R_rays, S, 3)
    densities_coarse = jnp.where(mask3, sigma, -80.0).reshape(B, R_rays, S, 1)

    N_importance = rendering_options["depth_resolution_importance"]
    if N_importance > 0:
        _, _, weights = ray_marcher(colors_coarse, densities_coarse, depths_coarse)
        depths_fine = sample_importance(rng_key, depths_coarse, weights, N_importance)

        sample_directions = jnp.broadcast_to(
            ray_directions[:, :, None, :], (B, R_rays, N_importance, 3)).reshape(B, -1, 3)
        sample_coordinates = (ray_origins[:, :, None, :]
                              + depths_fine * ray_directions[:, :, None, :]).reshape(B, -1, 3)

        _, _, canon_pts, _, _ = get_pts(input_data, sample_coordinates, sample_directions)
        gfeat = global_feature(params, sample_coordinates)
        pfeat = point_level_feature(params, canon_pts)
        xfeat = pixel_align_feature(params, canon_pts)
        sigma_f, rgb_f = run_model(params, gfeat, pfeat, xfeat)

        colors_fine = rgb_f.reshape(B, R_rays, N_importance, 3)
        densities_fine = sigma_f.reshape(B, R_rays, N_importance, 1)

        all_depths, all_colors, all_densities = unify_samples(
            depths_coarse, colors_coarse, densities_coarse,
            depths_fine, colors_fine, densities_fine)
        rgb_final, depth_final, weights = ray_marcher(all_colors, all_densities, all_depths)
    else:
        rgb_final, depth_final, weights = ray_marcher(colors_coarse, densities_coarse, depths_coarse)

    return rgb_final, depth_final, weights.sum(axis=2)


# ---------------------------------------------------------------------------
# Deterministic parameter init
# ---------------------------------------------------------------------------
def init_params(key):
    ks = jax.random.split(key, 9)
    p = {}
    # conv1d_reprojection: Conv1d(134+96+96=326, 32, 1)
    p["wc"] = jax.random.normal(ks[0], (326, 32), jnp.float32) * 0.05
    p["bc"] = jnp.zeros((32,), jnp.float32)
    # decoder MLP (OSGDecoder-style): 32 -> 64 -> 4 ([sigma, rgb])
    p["w1"] = jax.random.normal(ks[1], (32, 64), jnp.float32) * 0.1
    p["b1"] = jnp.zeros((64,), jnp.float32)
    p["w2"] = jax.random.normal(ks[2], (64, 4), jnp.float32) * 0.1
    p["b2"] = jnp.zeros((4,), jnp.float32)
    # deterministic feature stand-ins
    p["Pg"] = jax.random.normal(ks[3], (3, 134), jnp.float32)
    p["bg"] = jax.random.normal(ks[4], (134,), jnp.float32) * 0.1
    p["Pp"] = jax.random.normal(ks[5], (3, 96), jnp.float32)
    p["bp"] = jax.random.normal(ks[6], (96,), jnp.float32) * 0.1
    p["Px"] = jax.random.normal(ks[7], (3, 96), jnp.float32)
    p["bx"] = jax.random.normal(ks[8], (96,), jnp.float32) * 0.1
    return p


if __name__ == "__main__":
    key = jax.random.PRNGKey(0)
    k_par, k_orig, k_dir, k_imp = jax.random.split(key, 4)

    B, R_rays, S, Ni = 1, 16, 8, 8
    near, far = 2.0, 6.0

    params = init_params(k_par)

    ray_origins = jax.random.normal(k_orig, (B, R_rays, 3), jnp.float32) * 0.05
    dirs = jax.random.normal(k_dir, (B, R_rays, 3), jnp.float32)
    ray_directions = dirs / jnp.linalg.norm(dirs, axis=-1, keepdims=True)

    # vertices chosen on the rays so that the knn mask has both 0s and 1s
    z = jnp.linspace(near, far, S)
    coords_all = (ray_origins[:, :, None, :]
                  + z[None, None, :, None] * ray_directions[:, :, None, :]).reshape(B, -1, 3)
    vertices = coords_all[:, ::3, :]

    input_data = {
        "params": {"R": jnp.eye(3, dtype=jnp.float32),
                   "Th": jnp.zeros((1, 1, 3), jnp.float32)},
        "vertices": vertices,
        "t_params": None,  # TODO(synk): t_params only used by external coarse_deform_target2c
    }

    rendering_options = {
        "depth_resolution": S,
        "disparity_space_sampling": False,
        "depth_resolution_importance": Ni,
        "density_noise": 0,
        "clamp_mode": "softplus",
        "white_back": False,
    }

    rgb_final, depth_final, weight_sum = renderer_forward(
        params, ray_origins, ray_directions, near, far,
        input_data, rendering_options, k_imp)

    jax.block_until_ready((rgb_final, depth_final, weight_sum))
    assert rgb_final.shape == (B, R_rays, 3)
    assert depth_final.shape == (B, R_rays, 1)
    assert weight_sum.shape == (B, R_rays, 1)
    print("KERNEL_OK")
</pallas_src>

<mosaic_0001>
module attributes {stable_mosaic.version = 11 : i64} {
  func.func @_point_mlp_kernel(%arg0: i32, %arg1: memref<128x134xf32, #tpu.memory_space<vmem>>, %arg2: memref<128x96xf32, #tpu.memory_space<vmem>>, %arg3: memref<128x96xf32, #tpu.memory_space<vmem>>, %arg4: memref<134x64xf32, #tpu.memory_space<vmem>>, %arg5: memref<96x64xf32, #tpu.memory_space<vmem>>, %arg6: memref<96x64xf32, #tpu.memory_space<vmem>>, %arg7: memref<1x64xf32, #tpu.memory_space<vmem>>, %arg8: memref<64x4xf32, #tpu.memory_space<vmem>>, %arg9: memref<1x4xf32, #tpu.memory_space<vmem>>, %arg10: memref<128x4xf32, #tpu.memory_space<vmem>>) attributes {dimension_semantics = [#tpu.dimension_semantics<parallel>], iteration_bounds = array<i64: 1>, scalar_prefetch = 0 : i64, scratch_operands = 0 : i64, tpu.core_type = #tpu.core_type<tc>, window_params = [{transform_indices = @transform_0, window_bounds = array<i64: 128, 134>}, {transform_indices = @transform_1, window_bounds = array<i64: 128, 96>}, {transform_indices = @transform_2, window_bounds = array<i64: 128, 96>}, {pipeline_mode = #tpu.pipeline_mode<synchronous>, transform_indices = @transform_3, window_bounds = array<i64: 134, 64>}, {pipeline_mode = #tpu.pipeline_mode<synchronous>, transform_indices = @transform_4, window_bounds = array<i64: 96, 64>}, {pipeline_mode = #tpu.pipeline_mode<synchronous>, transform_indices = @transform_5, window_bounds = array<i64: 96, 64>}, {pipeline_mode = #tpu.pipeline_mode<synchronous>, transform_indices = @transform_6, window_bounds = array<i64: 1, 64>}, {pipeline_mode = #tpu.pipeline_mode<synchronous>, transform_indices = @transform_7, window_bounds = array<i64: 64, 4>}, {pipeline_mode = #tpu.pipeline_mode<synchronous>, transform_indices = @transform_8, window_bounds = array<i64: 1, 4>}, {transform_indices = @transform_9, window_bounds = array<i64: 128, 4>}]} {
    %c0 = arith.constant 0 : index
    %c0_0 = arith.constant 0 : index
    %0 = vector.load %arg1[%c0, %c0_0] : memref<128x134xf32, #tpu.memory_space<vmem>>, vector<128x134xf32>
    %c0_1 = arith.constant 0 : index
    %c0_2 = arith.constant 0 : index
    %1 = vector.load %arg4[%c0_1, %c0_2] : memref<134x64xf32, #tpu.memory_space<vmem>>, vector<134x64xf32>
    %cst = arith.constant dense<0.000000e+00> : vector<128x64xf32>
    %2 = tpu.matmul %0, %1, %cst {dimension_numbers = #tpu.dot_dimension_numbers<[1], [0], [0], [1], [0, 0, 1, 1], [], []>} : vector<128x134xf32>, vector<134x64xf32>, vector<128x64xf32> -> vector<128x64xf32>
    %c0_3 = arith.constant 0 : index
    %c0_4 = arith.constant 0 : index
    %3 = vector.load %arg2[%c0_3, %c0_4] : memref<128x96xf32, #tpu.memory_space<vmem>>, vector<128x96xf32>
    %c0_5 = arith.constant 0 : index
    %c0_6 = arith.constant 0 : index
    %4 = vector.load %arg5[%c0_5, %c0_6] : memref<96x64xf32, #tpu.memory_space<vmem>>, vector<96x64xf32>
    %cst_7 = arith.constant dense<0.000000e+00> : vector<128x64xf32>
    %5 = tpu.matmul %3, %4, %cst_7 {dimension_numbers = #tpu.dot_dimension_numbers<[1], [0], [0], [1], [0, 0, 1, 1], [], []>} : vector<128x96xf32>, vector<96x64xf32>, vector<128x64xf32> -> vector<128x64xf32>
    %6 = arith.addf %2, %5 : vector<128x64xf32>
    %c0_8 = arith.constant 0 : index
    %c0_9 = arith.constant 0 : index
    %7 = vector.load %arg3[%c0_8, %c0_9] : memref<128x96xf32, #tpu.memory_space<vmem>>, vector<128x96xf32>
    %c0_10 = arith.constant 0 : index
    %c0_11 = arith.constant 0 : index
    %8 = vector.load %arg6[%c0_10, %c0_11] : memref<96x64xf32, #tpu.memory_space<vmem>>, vector<96x64xf32>
    %cst_12 = arith.constant dense<0.000000e+00> : vector<128x64xf32>
    %9 = tpu.matmul %7, %8, %cst_12 {dimension_numbers = #tpu.dot_dimension_numbers<[1], [0], [0], [1], [0, 0, 1, 1], [], []>} : vector<128x96xf32>, vector<96x64xf32>, vector<128x64xf32> -> vector<128x64xf32>
    %10 = arith.addf %6, %9 : vector<128x64xf32>
    %c0_13 = arith.constant 0 : index
    %c0_14 = arith.constant 0 : index
    %11 = vector.load %arg7[%c0_13, %c0_14] : memref<1x64xf32, #tpu.memory_space<vmem>>, vector<1x64xf32>
    %12 = vector.broadcast %11 : vector<1x64xf32> to vector<128x64xf32>
    %13 = arith.addf %10, %12 : vector<128x64xf32>
    %cst_15 = arith.constant 0.000000e+00 : f32
    %14 = vector.broadcast %cst_15 : f32 to vector<128x64xf32>
    %15 = arith.maximumf %13, %14 : vector<128x64xf32>
    %16 = vector.broadcast %cst_15 : f32 to vector<128x64xf32>
    %17 = arith.subf %13, %16 : vector<128x64xf32>
    %18 = arith.cmpf one, %17, %17 : vector<128x64xf32>
    %19 = vector.broadcast %cst_15 : f32 to vector<128x64xf32>
    %20 = arith.addf %13, %19 : vector<128x64xf32>
    %21 = math.absf %17 : vector<128x64xf32>
    %cst_16 = arith.constant 0.000000e+00 : f32
    %22 = vector.broadcast %cst_16 : f32 to vector<128x64xf32>
    %23 = arith.subf %22, %21 : vector<128x64xf32>
    %24 = math.exp %23 : vector<128x64xf32>
    %25 = math.log1p %24 : vector<128x64xf32>
    %26 = arith.addf %15, %25 : vector<128x64xf32>
    %27 = arith.select %18, %20, %26 : vector<128x64xi1>, vector<128x64xf32>
    %c0_17 = arith.constant 0 : index
    %c0_18 = arith.constant 0 : index
    %28 = vector.load %arg8[%c0_17, %c0_18] : memref<64x4xf32, #tpu.memory_space<vmem>>, vector<64x4xf32>
    %cst_19 = arith.constant dense<0.000000e+00> : vector<128x4xf32>
    %29 = tpu.matmul %27, %28, %cst_19 {dimension_numbers = #tpu.dot_dimension_numbers<[1], [0], [0], [1], [0, 0, 1, 1], [], []>} : vector<128x64xf32>, vector<64x4xf32>, vector<128x4xf32> -> vector<128x4xf32>
    %c0_20 = arith.constant 0 : index
    %c0_21 = arith.constant 0 : index
    %30 = vector.load %arg9[%c0_20, %c0_21] : memref<1x4xf32, #tpu.memory_space<vmem>>, vector<1x4xf32>
    %31 = vector.broadcast %30 : vector<1x4xf32> to vector<128x4xf32>
    %32 = arith.addf %29, %31 : vector<128x4xf32>
    %33 = arith.negf %32 : vector<128x4xf32>
    %34 = math.exp %33 : vector<128x4xf32>
    %cst_22 = arith.constant 1.000000e+00 : f32
    %35 = vector.broadcast %cst_22 : f32 to vector<128x4xf32>
    %36 = arith.addf %35, %34 : vector<128x4xf32>
    %37 = arith.divf %35, %36 : vector<128x4xf32>
    %cst_23 = arith.constant 1.002000e+00 : f32
    %38 = vector.broadcast %cst_23 : f32 to vector<128x4xf32>
    %39 = arith.mulf %37, %38 : vector<128x4xf32>
    %cst_24 = arith.constant 1.000000e-03 : f32
    %40 = vector.broadcast %cst_24 : f32 to vector<128x4xf32>
    %41 = arith.subf %39, %40 : vector<128x4xf32>
    %42 = tpu.iota {dimensions = array<i32: 1>} : vector<128x4xi32>
    %c0_i32 = arith.constant 0 : i32
    %43 = vector.broadcast %c0_i32 : i32 to vector<128x4xi32>
    %44 = arith.cmpi eq, %42, %43 : vector<128x4xi32>
    %45 = arith.select %44, %32, %41 : vector<128x4xi1>, vector<128x4xf32>
    %c0_25 = arith.constant 0 : index
    %c0_26 = arith.constant 0 : index
    %46 = vector.load %arg10[%c0_25, %c0_26] : memref<128x4xf32, #tpu.memory_space<vmem>>, vector<128x4xf32>
    tpu.vector_store %arg10[%c0_25, %c0_26], %45 {strides = array<i32>} : memref<128x4xf32, #tpu.memory_space<vmem>>, vector<128x4xf32>,
    return
  }
  func.func @transform_0(%arg0: i32) -> (i32, i32) {
    %c0_i32 = arith.constant 0 : i32
    %c0_i32_0 = arith.constant 0 : i32
    return %arg0, %c0_i32 : i32, i32
  }
  func.func @transform_1(%arg0: i32) -> (i32, i32) {
    %c0_i32 = arith.constant 0 : i32
    %c0_i32_0 = arith.constant 0 : i32
    return %arg0, %c0_i32 : i32, i32
  }
  func.func @transform_2(%arg0: i32) -> (i32, i32) {
    %c0_i32 = arith.constant 0 : i32
    %c0_i32_0 = arith.constant 0 : i32
    return %arg0, %c0_i32 : i32, i32
  }
  func.func @transform_3(%arg0: i32) -> (i32, i32) {
    %c0_i32 = arith.constant 0 : i32
    %c0_i32_0 = arith.constant 0 : i32
    %c0_i32_1 = arith.constant 0 : i32
    return %c0_i32, %c0_i32_0 : i32, i32
  }
  func.func @transform_4(%arg0: i32) -> (i32, i32) {
    %c0_i32 = arith.constant 0 : i32
    %c0_i32_0 = arith.constant 0 : i32
    %c0_i32_1 = arith.constant 0 : i32
    return %c0_i32, %c0_i32_0 : i32, i32
  }
  func.func @transform_5(%arg0: i32) -> (i32, i32) {
    %c0_i32 = arith.constant 0 : i32
    %c0_i32_0 = arith.constant 0 : i32
    %c0_i32_1 = arith.constant 0 : i32
    return %c0_i32, %c0_i32_0 : i32, i32
  }
  func.func @transform_6(%arg0: i32) -> (i32, i32) {
    %c0_i32 = arith.constant 0 : i32
    %c0_i32_0 = arith.constant 0 : i32
    %c0_i32_1 = arith.constant 0 : i32
    return %c0_i32, %c0_i32_0 : i32, i32
  }
  func.func @transform_7(%arg0: i32) -> (i32, i32) {
    %c0_i32 = arith.constant 0 : i32
    %c0_i32_0 = arith.constant 0 : i32
    %c0_i32_1 = arith.constant 0 : i32
    return %c0_i32, %c0_i32_0 : i32, i32
  }
  func.func @transform_8(%arg0: i32) -> (i32, i32) {
    %c0_i32 = arith.constant 0 : i32
    %c0_i32_0 = arith.constant 0 : i32
    %c0_i32_1 = arith.constant 0 : i32
    return %c0_i32, %c0_i32_0 : i32, i32
  }
  func.func @transform_9(%arg0: i32) -> (i32, i32) {
    %c0_i32 = arith.constant 0 : i32
    %c0_i32_0 = arith.constant 0 : i32
    return %arg0, %c0_i32 : i32, i32
  }
}

</mosaic_0001>

<llo_original>
// kernel: tpu_custom_call.1
$region0: #{tpu_custom_call.1}
  #allocation0 [shape = 'u32[]', space=smem, size = 0x4, offset = 0x4, fixed_abs, tag = 'smem constant byte address 0x4 - core index']
  #allocation1 [shape = 'u32[72,128]{1,0:T(1,128)}', space=vmem, size = 0x9000, scoped, tag = 'internal scratch']
  %s0 = inlined_call_operand.vmem [shape: f32[128,134], index: 0, kind: input, shape index: {}]
  %s1 = inlined_call_operand.vmem [shape: f32[128,96], index: 1, kind: input, shape index: {}]
  %s2 = inlined_call_operand.vmem [shape: f32[128,96], index: 2, kind: input, shape index: {}]
  %s3 = inlined_call_operand.vmem [shape: f32[134,64], index: 3, kind: input, shape index: {}]
  %s4 = inlined_call_operand.vmem [shape: f32[96,64], index: 4, kind: input, shape index: {}]
  %s5 = inlined_call_operand.vmem [shape: f32[96,64], index: 5, kind: input, shape index: {}]
  %s6 = inlined_call_operand.vmem [shape: f32[1,64], index: 6, kind: input, shape index: {}]
  %s7 = inlined_call_operand.vmem [shape: f32[64,4], index: 7, kind: input, shape index: {}]
  %s8 = inlined_call_operand.vmem [shape: f32[1,4], index: 8, kind: input, shape index: {}]
  %s9 = inlined_call_operand.vmem [shape: f32[128,4], index: 9, kind: output, shape index: {}]
  %s10 = sld [smem:[#allocation0]]
  $region46: #{tpu_custom_call.1} parent=0
    _
  %s12 = ssub.s32 1, %s10
  %s13 = scalar_select 0, %s12, %s10
  // Predicated region
  $region2: #{tpu_custom_call.1} parent=0 // pred_check
    _
  $region3: #{tpu_custom_call.1} parent=0 // pred_check_branch
    %15 = sbr.rel (0) target = $region5
  $region4: #{tpu_custom_call.1} parent=0 // pred_region
    _
  $region5: #{tpu_custom_call.1} parent=0 // pred_fallthru
    _
  // Predicated region
  $region6: #{tpu_custom_call.1} parent=0 // pred_check
    _
  $region7: #{tpu_custom_call.1} parent=0 // pred_check_branch
    %17 = sbr.rel (0) target = $region9
  $region8: #{tpu_custom_call.1} parent=0 // pred_region
    _
  $region9: #{tpu_custom_call.1} parent=0 // pred_fallthru
    _
  // Predicated region
  $region10: #{tpu_custom_call.1} parent=0 // pred_check
    _
  $region11: #{tpu_custom_call.1} parent=0 // pred_check_branch
    %19 = sbr.rel (0) target = $region13
  $region12: #{tpu_custom_call.1} parent=0 // pred_region
    _
  $region13: #{tpu_custom_call.1} parent=0 // pred_fallthru
    _
  // Predicated region
  $region14: #{tpu_custom_call.1} parent=0 // pred_check
    _
  $region15: #{tpu_custom_call.1} parent=0 // pred_check_branch
    %21 = sbr.rel (0) target = $region17
  $region16: #{tpu_custom_call.1} parent=0 // pred_region
    _
  $region17: #{tpu_custom_call.1} parent=0 // pred_fallthru
    _
  // Predicated region
  $region18: #{tpu_custom_call.1} parent=0 // pred_check
    _
  $region19: #{tpu_custom_call.1} parent=0 // pred_check_branch
    %23 = sbr.rel (0) target = $region21
  $region20: #{tpu_custom_call.1} parent=0 // pred_region
    _
  $region21: #{tpu_custom_call.1} parent=0 // pred_fallthru
    _
  // Predicated region
  $region22: #{tpu_custom_call.1} parent=0 // pred_check
    _
  $region23: #{tpu_custom_call.1} parent=0 // pred_check_branch
    %25 = sbr.rel (0) target = $region25
  $region24: #{tpu_custom_call.1} parent=0 // pred_region
    _
  $region25: #{tpu_custom_call.1} parent=0 // pred_fallthru
    _
  // Predicated region
  $region26: #{tpu_custom_call.1} parent=0 // pred_check
    _
  $region27: #{tpu_custom_call.1} parent=0 // pred_check_branch
    %27 = sbr.rel (0) target = $region29
  $region28: #{tpu_custom_call.1} parent=0 // pred_region
    _
  $region29: #{tpu_custom_call.1} parent=0 // pred_fallthru
    _
  // Predicated region
  $region30: #{tpu_custom_call.1} parent=0 // pred_check
    _
  $region31: #{tpu_custom_call.1} parent=0 // pred_check_branch
    %29 = sbr.rel (0) target = $region33
  $region32: #{tpu_custom_call.1} parent=0 // pred_region
    _
  $region33: #{tpu_custom_call.1} parent=0 // pred_fallthru
    _
  // Predicated region
  $region34: #{tpu_custom_call.1} parent=0 // pred_check
    _
  $region35: #{tpu_custom_call.1} parent=0 // pred_check_branch
    %31 = sbr.rel (0) target = $region37
  $region36: #{tpu_custom_call.1} parent=0 // pred_region
    _
  $region37: #{tpu_custom_call.1} parent=0 // pred_fallthru
    _
  %v32 = vld [vmem:[%s0] sm:$0xff]
  %v33 = vld [vmem:[%s0 + $0x8] sm:$0xff]
  %v34 = vld [vmem:[%s0 + $0x10] sm:$0xff]
  %v35 = vld [vmem:[%s0 + $0x18] sm:$0xff]
  %v36 = vld [vmem:[%s0 + $0x20] sm:$0xff]
  %v37 = vld [vmem:[%s0 + $0x28] sm:$0xff]
  %v38 = vld [vmem:[%s0 + $0x30] sm:$0xff]
  %v39 = vld [vmem:[%s0 + $0x38] sm:$0xff]
  %v40 = vld [vmem:[%s0 + $0x40] sm:$0xff]
  %v41 = vld [vmem:[%s0 + $0x48] sm:$0xff]
  %v42 = vld [vmem:[%s0 + $0x50] sm:$0xff]
  %v43 = vld [vmem:[%s0 + $0x58] sm:$0xff]
  %v44 = vld [vmem:[%s0 + $0x60] sm:$0xff]
  %v45 = vld [vmem:[%s0 + $0x68] sm:$0xff]
  %v46 = vld [vmem:[%s0 + $0x70] sm:$0xff]
  %v47 = vld [vmem:[%s0 + $0x78] sm:$0xff]
  %v48 = vld [vmem:[%s0 + $0x80] sm:$0xff]
  %v49 = vld [vmem:[%s0 + $0x88] sm:$0xff]
  %v50 = vld [vmem:[%s0 + $0x90] sm:$0xff]
  %v51 = vld [vmem:[%s0 + $0x98] sm:$0xff]
  %v52 = vld [vmem:[%s0 + $0xa0] sm:$0xff]
  %v53 = vld [vmem:[%s0 + $0xa8] sm:$0xff]
  %v54 = vld [vmem:[%s0 + $0xb0] sm:$0xff]
  %v55 = vld [vmem:[%s0 + $0xb8] sm:$0xff]
  %v56 = vld [vmem:[%s0 + $0xc0] sm:$0xff]
  %v57 = vld [vmem:[%s0 + $0xc8] sm:$0xff]
  %v58 = vld [vmem:[%s0 + $0xd0] sm:$0xff]
  %v59 = vld [vmem:[%s0 + $0xd8] sm:$0xff]
  %v60 = vld [vmem:[%s0 + $0xe0] sm:$0xff]
  %v61 = vld [vmem:[%s0 + $0xe8] sm:$0xff]
  %v62 = vld [vmem:[%s0 + $0xf0] sm:$0xff]
  %v63 = vld [vmem:[%s0 + $0xf8] sm:$0xff]
  %v64 = vld [vmem:[%s3] sm:$0xff]
  %v65 = vld [vmem:[%s3 + $0x8] sm:$0xff]
  %v66 = vld [vmem:[%s3 + $0x10] sm:$0xff]
  %v67 = vld [vmem:[%s3 + $0x18] sm:$0xff]
  %v68 = vld [vmem:[%s3 + $0x20] sm:$0xff]
  %v69 = vld [vmem:[%s3 + $0x28] sm:$0xff]
  %v70 = vld [vmem:[%s3 + $0x30] sm:$0xff]
  %v71 = vld [vmem:[%s3 + $0x38] sm:$0xff]
  %v72 = vld [vmem:[%s3 + $0x40] sm:$0xff]
  %v73 = vld [vmem:[%s3 + $0x48] sm:$0xff]
  %v74 = vld [vmem:[%s3 + $0x50] sm:$0xff]
  %v75 = vld [vmem:[%s3 + $0x58] sm:$0xff]
  %v76 = vld [vmem:[%s3 + $0x60] sm:$0xff]
  %v77 = vld [vmem:[%s3 + $0x68] sm:$0xff]
  %v78 = vld [vmem:[%s3 + $0x70] sm:$0xff]
  %v79 = vld [vmem:[%s3 + $0x78] sm:$0xff]
  %v80 = vld [vmem:[%s3 + $0x80] sm:$0x3f]
  %v81 = vld [vmem:[%s1] sm:$0xff]
  %v82 = vld [vmem:[%s1 + $0x8] sm:$0xff]
  %v83 = vld [vmem:[%s1 + $0x10] sm:$0xff]
  %v84 = vld [vmem:[%s1 + $0x18] sm:$0xff]
  %v85 = vld [vmem:[%s1 + $0x20] sm:$0xff]
  %v86 = vld [vmem:[%s1 + $0x28] sm:$0xff]
  %v87 = vld [vmem:[%s1 + $0x30] sm:$0xff]
  %v88 = vld [vmem:[%s1 + $0x38] sm:$0xff]
  %v89 = vld [vmem:[%s1 + $0x40] sm:$0xff]
  %v90 = vld [vmem:[%s1 + $0x48] sm:$0xff]
  %v91 = vld [vmem:[%s1 + $0x50] sm:$0xff]
  %v92 = vld [vmem:[%s1 + $0x58] sm:$0xff]
  %v93 = vld [vmem:[%s1 + $0x60] sm:$0xff]
  %v94 = vld [vmem:[%s1 + $0x68] sm:$0xff]
  %v95 = vld [vmem:[%s1 + $0x70] sm:$0xff]
  %v96 = vld [vmem:[%s1 + $0x78] sm:$0xff]
  %v97 = vld [vmem:[%s4] sm:$0xff]
  %v98 = vld [vmem:[%s4 + $0x8] sm:$0xff]
  %v99 = vld [vmem:[%s4 + $0x10] sm:$0xff]
  %v100 = vld [vmem:[%s4 + $0x18] sm:$0xff]
  %v101 = vld [vmem:[%s4 + $0x20] sm:$0xff]
  %v102 = vld [vmem:[%s4 + $0x28] sm:$0xff]
  %v103 = vld [vmem:[%s4 + $0x30] sm:$0xff]
  %v104 = vld [vmem:[%s4 + $0x38] sm:$0xff]
  %v105 = vld [vmem:[%s4 + $0x40] sm:$0xff]
  %v106 = vld [vmem:[%s4 + $0x48] sm:$0xff]
  %v107 = vld [vmem:[%s4 + $0x50] sm:$0xff]
  %v108 = vld [vmem:[%s4 + $0x58] sm:$0xff]
  %vm109 = vcmask 785408
  %v111 = vsel %vm109, %v81, 0
  %v114 = vsel %vm109, %v82, 0
  %v117 = vsel %vm109, %v83, 0
  %v120 = vsel %vm109, %v84, 0
  %v123 = vsel %vm109, %v85, 0
  %v126 = vsel %vm109, %v86, 0
  %v129 = vsel %vm109, %v87, 0
  %v132 = vsel %vm109, %v88, 0
  %v135 = vsel %vm109, %v89, 0
  %v138 = vsel %vm109, %v90, 0
  %v141 = vsel %vm109, %v91, 0
  %v144 = vsel %vm109, %v92, 0
  %v147 = vsel %vm109, %v93, 0
  %v150 = vsel %vm109, %v94, 0
  %v153 = vsel %vm109, %v95, 0
  %v156 = vsel %vm109, %v96, 0
  %158 = vmatpush.msra.mxu0 0.0
  %159 = vmatpush.msra.mxu0 0.0
  %160 = vmatpush.msra.mxu0 0.0
  %161 = vmatpush.msra.mxu0 0.0
  %162 = vmatpush.msra.mxu0 %v108
  %163 = vmatpush.msra.mxu0 %v107
  %164 = vmatpush.msra.mxu0 %v106
  %165 = vmatpush.msra.mxu0 %v105
  %166 = vmatpush.msra.mxu0 %v104
  %167 = vmatpush.msra.mxu0 %v103
  %168 = vmatpush.msra.mxu0 %v102
  %169 = vmatpush.msra.mxu0 %v101
  %170 = vmatpush.msra.mxu0 %v100
  %171 = vmatpush.msra.mxu0 %v99
  %172 = vmatpush.msra.mxu0 %v98
  %173 = vmatpush.msra.mxu0 %v97
  %174 = vmatmul.f32.gmra.mxu0 %v111
  %v175 = vpop.f32.mrf.mxu0
  %v176 = vadd.f32 0.0, %v175
  %177 = vmatmul.f32.gmra.mxu0 %v114
  %v178 = vpop.f32.mrf.mxu0
  %v179 = vadd.f32 0.0, %v178
  %180 = vmatmul.f32.gmra.mxu0 %v117
  %v181 = vpop.f32.mrf.mxu0
  %v182 = vadd.f32 0.0, %v181
  %183 = vmatmul.f32.gmra.mxu0 %v120
  %v184 = vpop.f32.mrf.mxu0
  %v185 = vadd.f32 0.0, %v184
  %186 = vmatmul.f32.gmra.mxu0 %v123
  %v187 = vpop.f32.mrf.mxu0
  %v188 = vadd.f32 0.0, %v187
  %189 = vmatmul.f32.gmra.mxu0 %v126
  %v190 = vpop.f32.mrf.mxu0
  %v191 = vadd.f32 0.0, %v190
  %192 = vmatmul.f32.gmra.mxu0 %v129
  %v193 = vpop.f32.mrf.mxu0
  %v194 = vadd.f32 0.0, %v193
  %195 = vmatmul.f32.gmra.mxu0 %v132
  %v196 = vpop.f32.mrf.mxu0
  %v197 = vadd.f32 0.0, %v196
  %198 = vmatmul.f32.gmra.mxu0 %v135
  %v199 = vpop.f32.mrf.mxu0
  %v200 = vadd.f32 0.0, %v199
  %201 = vmatmul.f32.gmra.mxu0 %v138
  %v202 = vpop.f32.mrf.mxu0
  %v203 = vadd.f32 0.0, %v202
  %204 = vmatmul.f32.gmra.mxu0 %v141
  %v205 = vpop.f32.mrf.mxu0
  %v206 = vadd.f32 0.0, %v205
  %207 = vmatmul.f32.gmra.mxu0 %v144
  %v208 = vpop.f32.mrf.mxu0
  %v209 = vadd.f32 0.0, %v208
  %210 = vmatmul.f32.gmra.mxu0 %v147
  %v211 = vpop.f32.mrf.mxu0
  %v212 = vadd.f32 0.0, %v211
  %213 = vmatmul.f32.gmra.mxu0 %v150
  %v214 = vpop.f32.mrf.mxu0
  %v215 = vadd.f32 0.0, %v214
  %216 = vmatmul.f32.gmra.mxu0 %v153
  %v217 = vpop.f32.mrf.mxu0
  %v218 = vadd.f32 0.0, %v217
  %219 = vmatmul.f32.gmra.mxu0 %v156
  %v220 = vpop.f32.mrf.mxu0
  %v221 = vadd.f32 0.0, %v220
  %222 = vdwg.mxu0
  %vm223 = vcmask 48128
  %v225 = vsel %vm223, %v33, 0
  %v228 = vsel %vm223, %v35, 0
  %v231 = vsel %vm223, %v37, 0
  %v234 = vsel %vm223, %v39, 0
  %v237 = vsel %vm223, %v41, 0
  %v240 = vsel %vm223, %v43, 0
  %v243 = vsel %vm223, %v45, 0
  %v246 = vsel %vm223, %v47, 0
  %v249 = vsel %vm223, %v49, 0
  %v252 = vsel %vm223, %v51, 0
  %v255 = vsel %vm223, %v53, 0
  %v258 = vsel %vm223, %v55, 0
  %v261 = vsel %vm223, %v57, 0
  %v264 = vsel %vm223, %v59, 0
  %v267 = vsel %vm223, %v61, 0
  %v270 = vsel %vm223, %v63, 0
  %vm272 = vcmask 1045504
  %v274 = vsel %vm272, %v80, 0
  %276 = vmatpush.msra.mxu0 %v79
  %277 = vmatpush.msra.mxu0 %v78
  %278 = vmatpush.msra.mxu0 %v77
  %279 = vmatpush.msra.mxu0 %v76
  %280 = vmatpush.msra.mxu0 %v75
  %281 = vmatpush.msra.mxu0 %v74
  %282 = vmatpush.msra.mxu0 %v73
  %283 = vmatpush.msra.mxu0 %v72
  %284 = vmatpush.msra.mxu0 %v71
  %285 = vmatpush.msra.mxu0 %v70
  %286 = vmatpush.msra.mxu0 %v69
  %287 = vmatpush.msra.mxu0 %v68
  %288 = vmatpush.msra.mxu0 %v67
  %289 = vmatpush.msra.mxu0 %v66
  %290 = vmatpush.msra.mxu0 %v65
  %291 = vmatpush.msra.mxu0 %v64
  %292 = vmatmul.f32.gmra.mxu0 %v32
  %v293 = vpop.f32.mrf.mxu0
  %v294 = vadd.f32 %v176, %v293
  %295 = vmatmul.f32.gmra.mxu0 %v34
  %v296 = vpop.f32.mrf.mxu0
  %v297 = vadd.f32 %v179, %v296
  %298 = vmatmul.f32.gmra.mxu0 %v36
  %v299 = vpop.f32.mrf.mxu0
  %v300 = vadd.f32 %v182, %v299
  %301 = vmatmul.f32.gmra.mxu0 %v38
  %v302 = vpop.f32.mrf.mxu0
  %v303 = vadd.f32 %v185, %v302
  %304 = vmatmul.f32.gmra.mxu0 %v40
  %v305 = vpop.f32.mrf.mxu0
  %v306 = vadd.f32 %v188, %v305
  %307 = vmatmul.f32.gmra.mxu0 %v42
  %v308 = vpop.f32.mrf.mxu0
  %v309 = vadd.f32 %v191, %v308
  %310 = vmatmul.f32.gmra.mxu0 %v44
  %v311 = vpop.f32.mrf.mxu0
  %v312 = vadd.f32 %v194, %v311
  %313 = vmatmul.f32.gmra.mxu0 %v46
  %v314 = vpop.f32.mrf.mxu0
  %v315 = vadd.f32 %v197, %v314
  %316 = vmatmul.f32.gmra.mxu0 %v48
  %v317 = vpop.f32.mrf.mxu0
  %v318 = vadd.f32 %v200, %v317
  %319 = vmatmul.f32.gmra.mxu0 %v50
  %v320 = vpop.f32.mrf.mxu0
  %v321 = vadd.f32 %v203, %v320
  %322 = vmatmul.f32.gmra.mxu0 %v52
  %v323 = vpop.f32.mrf.mxu0
  %v324 = vadd.f32 %v206, %v323
  %325 = vmatmul.f32.gmra.mxu0 %v54
  %v326 = vpop.f32.mrf.mxu0
  %v327 = vadd.f32 %v209, %v326
  %328 = vmatmul.f32.gmra.mxu0 %v56
  %v329 = vpop.f32.mrf.mxu0
  %v330 = vadd.f32 %v212, %v329
  %331 = vmatmul.f32.gmra.mxu0 %v58
  %v332 = vpop.f32.mrf.mxu0
  %v333 = vadd.f32 %v215, %v332
  %334 = vmatmul.f32.gmra.mxu0 %v60
  %v335 = vpop.f32.mrf.mxu0
  %v336 = vadd.f32 %v218, %v335
  %337 = vmatmul.f32.gmra.mxu0 %v62
  %v338 = vpop.f32.mrf.mxu0
  %v339 = vadd.f32 %v221, %v338
  %340 = vdwg.mxu0
  %341 = vmatpush.msra.mxu0 0.0
  %342 = vmatpush.msra.mxu0 0.0
  %343 = vmatpush.msra.mxu0 0.0
  %344 = vmatpush.msra.mxu0 0.0
  %345 = vmatpush.msra.mxu0 0.0
  %346 = vmatpush.msra.mxu0 0.0
  %347 = vmatpush.msra.mxu0 0.0
  %348 = vmatpush.msra.mxu0 0.0
  %349 = vmatpush.msra.mxu0 0.0
  %350 = vmatpush.msra.mxu0 0.0
  %351 = vmatpush.msra.mxu0 0.0
  %352 = vmatpush.msra.mxu0 0.0
  %353 = vmatpush.msra.mxu0 0.0
  %354 = vmatpush.msra.mxu0 0.0
  %355 = vmatpush.msra.mxu0 0.0
  %356 = vmatpush.msra.mxu0 %v274
  %357 = vmatmul.f32.gmra.mxu0 %v225
  %v358 = vpop.f32.mrf.mxu0
  %v359 = vadd.f32 %v294, %v358
  %360 = vmatmul.f32.gmra.mxu0 %v228
  %v361 = vpop.f32.mrf.mxu0
  %v362 = vadd.f32 %v297, %v361
  %363 = vmatmul.f32.gmra.mxu0 %v231
  %v364 = vpop.f32.mrf.mxu0
  %v365 = vadd.f32 %v300, %v364
  %366 = vmatmul.f32.gmra.mxu0 %v234
  %v367 = vpop.f32.mrf.mxu0
  %v368 = vadd.f32 %v303, %v367
  %369 = vmatmul.f32.gmra.mxu0 %v237
  %v370 = vpop.f32.mrf.mxu0
  %v371 = vadd.f32 %v306, %v370
  %372 = vmatmul.f32.gmra.mxu0 %v240
  %v373 = vpop.f32.mrf.mxu0
  %v374 = vadd.f32 %v309, %v373
  %375 = vmatmul.f32.gmra.mxu0 %v243
  %v376 = vpop.f32.mrf.mxu0
  %v377 = vadd.f32 %v312, %v376
  %378 = vmatmul.f32.gmra.mxu0 %v246
  %v379 = vpop.f32.mrf.mxu0
  %v380 = vadd.f32 %v315, %v379
  %381 = vmatmul.f32.gmra.mxu0 %v249
  %v382 = vpop.f32.mrf.mxu0
  %v383 = vadd.f32 %v318, %v382
  %384 = vmatmul.f32.gmra.mxu0 %v252
  %v385 = vpop.f32.mrf.mxu0
  %v386 = vadd.f32 %v321, %v385
  %387 = vmatmul.f32.gmra.mxu0 %v255
  %v388 = vpop.f32.mrf.mxu0
  %v389 = vadd.f32 %v324, %v388
  %390 = vmatmul.f32.gmra.mxu0 %v258
  %v391 = vpop.f32.mrf.mxu0
  %v392 = vadd.f32 %v327, %v391
  %393 = vmatmul.f32.gmra.mxu0 %v261
  %v394 = vpop.f32.mrf.mxu0
  %v395 = vadd.f32 %v330, %v394
  %396 = vmatmul.f32.gmra.mxu0 %v264
  %v397 = vpop.f32.mrf.mxu0
  %v398 = vadd.f32 %v333, %v397
  %399 = vmatmul.f32.gmra.mxu0 %v267
  %v400 = vpop.f32.mrf.mxu0
  %v401 = vadd.f32 %v336, %v400
  %402 = vmatmul.f32.gmra.mxu0 %v270
  %v403 = vpop.f32.mrf.mxu0
  %v404 = vadd.f32 %v339, %v403
  %405 = vdwg.mxu0
  %v406 = vld [vmem:[%s2] sm:$0xff]
  %v407 = vld [vmem:[%s2 + $0x8] sm:$0xff]
  %v408 = vld [vmem:[%s2 + $0x10] sm:$0xff]
  %v409 = vld [vmem:[%s2 + $0x18] sm:$0xff]
  %v410 = vld [vmem:[%s2 + $0x20] sm:$0xff]
  %v411 = vld [vmem:[%s2 + $0x28] sm:$0xff]
  %v412 = vld [vmem:[%s2 + $0x30] sm:$0xff]
  %v413 = vld [vmem:[%s2 + $0x38] sm:$0xff]
  %v414 = vld [vmem:[%s2 + $0x40] sm:$0xff]
  %v415 = vld [vmem:[%s2 + $0x48] sm:$0xff]
  %v416 = vld [vmem:[%s2 + $0x50] sm:$0xff]
  %v417 = vld [vmem:[%s2 + $0x58] sm:$0xff]
  %v418 = vld [vmem:[%s2 + $0x60] sm:$0xff]
  %v419 = vld [vmem:[%s2 + $0x68] sm:$0xff]
  %v420 = vld [vmem:[%s2 + $0x70] sm:$0xff]
  %v421 = vld [vmem:[%s2 + $0x78] sm:$0xff]
  %v422 = vld [vmem:[%s5] sm:$0xff]
  %v423 = vld [vmem:[%s5 + $0x8] sm:$0xff]
  %v424 = vld [vmem:[%s5 + $0x10] sm:$0xff]
  %v425 = vld [vmem:[%s5 + $0x18] sm:$0xff]
  %v426 = vld [vmem:[%s5 + $0x20] sm:$0xff]
  %v427 = vld [vmem:[%s5 + $0x28] sm:$0xff]
  %v428 = vld [vmem:[%s5 + $0x30] sm:$0xff]
  %v429 = vld [vmem:[%s5 + $0x38] sm:$0xff]
  %v430 = vld [vmem:[%s5 + $0x40] sm:$0xff]
  %v431 = vld [vmem:[%s5 + $0x48] sm:$0xff]
  %v432 = vld [vmem:[%s5 + $0x50] sm:$0xff]
  %v433 = vld [vmem:[%s5 + $0x58] sm:$0xff]
  %v435 = vsel %vm109, %v406, 0
  %v438 = vsel %vm109, %v407, 0
  %v441 = vsel %vm109, %v408, 0
  %v444 = vsel %vm109, %v409, 0
  %v447 = vsel %vm109, %v410, 0
  %v450 = vsel %vm109, %v411, 0
  %v453 = vsel %vm109, %v412, 0
  %v456 = vsel %vm109, %v413, 0
  %v459 = vsel %vm109, %v414, 0
  %v462 = vsel %vm109, %v415, 0
  %v465 = vsel %vm109, %v416, 0
  %v468 = vsel %vm109, %v417, 0
  %v471 = vsel %vm109, %v418, 0
  %v474 = vsel %vm109, %v419, 0
  %v477 = vsel %vm109, %v420, 0
  %v480 = vsel %vm109, %v421, 0
  %482 = vmatpush.msra.mxu0 0.0
  %483 = vmatpush.msra.mxu0 0.0
  %484 = vmatpush.msra.mxu0 0.0
  %485 = vmatpush.msra.mxu0 0.0
  %486 = vmatpush.msra.mxu0 %v433
  %487 = vmatpush.msra.mxu0 %v432
  %488 = vmatpush.msra.mxu0 %v431
  %489 = vmatpush.msra.mxu0 %v430
  %490 = vmatpush.msra.mxu0 %v429
  %491 = vmatpush.msra.mxu0 %v428
  %492 = vmatpush.msra.mxu0 %v427
  %493 = vmatpush.msra.mxu0 %v426
  %494 = vmatpush.msra.mxu0 %v425
  %495 = vmatpush.msra.mxu0 %v424
  %496 = vmatpush.msra.mxu0 %v423
  %497 = vmatpush.msra.mxu0 %v422
  %498 = vmatmul.f32.gmra.mxu0 %v435
  %v499 = vpop.f32.mrf.mxu0
  %v500 = vadd.f32 0.0, %v499
  %501 = vmatmul.f32.gmra.mxu0 %v438
  %v502 = vpop.f32.mrf.mxu0
  %v503 = vadd.f32 0.0, %v502
  %504 = vmatmul.f32.gmra.mxu0 %v441
  %v505 = vpop.f32.mrf.mxu0
  %v506 = vadd.f32 0.0, %v505
  %507 = vmatmul.f32.gmra.mxu0 %v444
  %v508 = vpop.f32.mrf.mxu0
  %v509 = vadd.f32 0.0, %v508
  %510 = vmatmul.f32.gmra.mxu0 %v447
  %v511 = vpop.f32.mrf.mxu0
  %v512 = vadd.f32 0.0, %v511
  %513 = vmatmul.f32.gmra.mxu0 %v450
  %v514 = vpop.f32.mrf.mxu0
  %v515 = vadd.f32 0.0, %v514
  %516 = vmatmul.f32.gmra.mxu0 %v453
  %v517 = vpop.f32.mrf.mxu0
  %v518 = vadd.f32 0.0, %v517
  %519 = vmatmul.f32.gmra.mxu0 %v456
  %v520 = vpop.f32.mrf.mxu0
  %v521 = vadd.f32 0.0, %v520
  %522 = vmatmul.f32.gmra.mxu0 %v459
  %v523 = vpop.f32.mrf.mxu0
  %v524 = vadd.f32 0.0, %v523
  %525 = vmatmul.f32.gmra.mxu0 %v462
  %v526 = vpop.f32.mrf.mxu0
  %v527 = vadd.f32 0.0, %v526
  %528 = vmatmul.f32.gmra.mxu0 %v465
  %v529 = vpop.f32.mrf.mxu0
  %v530 = vadd.f32 0.0, %v529
  %531 = vmatmul.f32.gmra.mxu0 %v468
  %v532 = vpop.f32.mrf.mxu0
  %v533 = vadd.f32 0.0, %v532
  %534 = vmatmul.f32.gmra.mxu0 %v471
  %v535 = vpop.f32.mrf.mxu0
  %v536 = vadd.f32 0.0, %v535
  %537 = vmatmul.f32.gmra.mxu0 %v474
  %v538 = vpop.f32.mrf.mxu0
  %v539 = vadd.f32 0.0, %v538
  %540 = vmatmul.f32.gmra.mxu0 %v477
  %v541 = vpop.f32.mrf.mxu0
  %v542 = vadd.f32 0.0, %v541
  %543 = vmatmul.f32.gmra.mxu0 %v480
  %v544 = vpop.f32.mrf.mxu0
  %v545 = vadd.f32 0.0, %v544
  %546 = vdwg.mxu0
  %v547 = vadd.f32 %v359, %v500
  %v548 = vadd.f32 %v362, %v503
  %v549 = vadd.f32 %v365, %v506
  %v550 = vadd.f32 %v368, %v509
  %v551 = vadd.f32 %v371, %v512
  %v552 = vadd.f32 %v374, %v515
  %v553 = vadd.f32 %v377, %v518
  %v554 = vadd.f32 %v380, %v521
  %v555 = vadd.f32 %v383, %v524
  %v556 = vadd.f32 %v386, %v527
  %v557 = vadd.f32 %v389, %v530
  %v558 = vadd.f32 %v392, %v533
  %v559 = vadd.f32 %v395, %v536
  %v560 = vadd.f32 %v398, %v539
  %v561 = vadd.f32 %v401, %v542
  %v562 = vadd.f32 %v404, %v545
  %v563 = vld [vmem:[%s6] sm:$0x1]
  %v565 = vperm.slane %v563, 0
  %v567 = vadd.f32 %v547, %v565
  %v568 = vadd.f32 %v548, %v565
  %v569 = vadd.f32 %v549, %v565
  %v570 = vadd.f32 %v550, %v565
  %v571 = vadd.f32 %v551, %v565
  %v572 = vadd.f32 %v552, %v565
  %v573 = vadd.f32 %v553, %v565
  %v574 = vadd.f32 %v554, %v565
  %v575 = vadd.f32 %v555, %v565
  %v576 = vadd.f32 %v556, %v565
  %v577 = vadd.f32 %v557, %v565
  %v578 = vadd.f32 %v558, %v565
  %v579 = vadd.f32 %v559, %v565
  %v580 = vadd.f32 %v560, %v565
  %v581 = vadd.f32 %v561, %v565
  %v582 = vadd.f32 %v562, %v565
  %v583 = vmax.f32 %v567, 0.0
  %v584 = vmax.f32 %v568, 0.0
  %v585 = vmax.f32 %v569, 0.0
  %v586 = vmax.f32 %v570, 0.0
  %v587 = vmax.f32 %v571, 0.0
  %v588 = vmax.f32 %v572, 0.0
  %v589 = vmax.f32 %v573, 0.0
  %v590 = vmax.f32 %v574, 0.0
  %v591 = vmax.f32 %v575, 0.0
  %v592 = vmax.f32 %v576, 0.0
  %v593 = vmax.f32 %v577, 0.0
  %v594 = vmax.f32 %v578, 0.0
  %v595 = vmax.f32 %v579, 0.0
  %v596 = vmax.f32 %v580, 0.0
  %v597 = vmax.f32 %v581, 0.0
  %v598 = vmax.f32 %v582, 0.0
  %vm599 = vcmp.ne.f32.partialorder %v567, %v567
  %vm600 = vcmp.ne.f32.partialorder %v568, %v568
  %vm601 = vcmp.ne.f32.partialorder %v569, %v569
  %vm602 = vcmp.ne.f32.partialorder %v570, %v570
  %vm603 = vcmp.ne.f32.partialorder %v571, %v571
  %vm604 = vcmp.ne.f32.partialorder %v572, %v572
  %vm605 = vcmp.ne.f32.partialorder %v573, %v573
  %vm606 = vcmp.ne.f32.partialorder %v574, %v574
  %vm607 = vcmp.ne.f32.partialorder %v575, %v575
  %vm608 = vcmp.ne.f32.partialorder %v576, %v576
  %vm609 = vcmp.ne.f32.partialorder %v577, %v577
  %vm610 = vcmp.ne.f32.partialorder %v578, %v578
  %vm611 = vcmp.ne.f32.partialorder %v579, %v579
  %vm612 = vcmp.ne.f32.partialorder %v580, %v580
  %vm613 = vcmp.ne.f32.partialorder %v581, %v581
  %vm614 = vcmp.ne.f32.partialorder %v582, %v582
  %v615 = vadd.f32 %v567, 0.0
  %v616 = vadd.f32 %v568, 0.0
  %v617 = vadd.f32 %v569, 0.0
  %v618 = vadd.f32 %v570, 0.0
  %v619 = vadd.f32 %v571, 0.0
  %v620 = vadd.f32 %v572, 0.0
  %v621 = vadd.f32 %v573, 0.0
  %v622 = vadd.f32 %v574, 0.0
  %v623 = vadd.f32 %v575, 0.0
  %v624 = vadd.f32 %v576, 0.0
  %v625 = vadd.f32 %v577, 0.0
  %v626 = vadd.f32 %v578, 0.0
  %v627 = vadd.f32 %v579, 0.0
  %v628 = vadd.f32 %v580, 0.0
  %v629 = vadd.f32 %v581, 0.0
  %v630 = vadd.f32 %v582, 0.0
  %v631 = vand.u32 2147483647, %v567
  %v632 = vand.u32 2147483647, %v568
  %v633 = vand.u32 2147483647, %v569
  %v634 = vand.u32 2147483647, %v570
  %v635 = vand.u32 2147483647, %v571
  %v636 = vand.u32 2147483647, %v572
  %v637 = vand.u32 2147483647, %v573
  %v638 = vand.u32 2147483647, %v574
  %v639 = vand.u32 2147483647, %v575
  %v640 = vand.u32 2147483647, %v576
  %v641 = vand.u32 2147483647, %v577
  %v642 = vand.u32 2147483647, %v578
  %v643 = vand.u32 2147483647, %v579
  %v644 = vand.u32 2147483647, %v580
  %v645 = vand.u32 2147483647, %v581
  %v646 = vand.u32 2147483647, %v582
  %v647 = vsub.f32 0.0, %v631
  %v648 = vsub.f32 0.0, %v632
  %v649 = vsub.f32 0.0, %v633
  %v650 = vsub.f32 0.0, %v634
  %v651 = vsub.f32 0.0, %v635
  %v652 = vsub.f32 0.0, %v636
  %v653 = vsub.f32 0.0, %v637
  %v654 = vsub.f32 0.0, %v638
  %v655 = vsub.f32 0.0, %v639
  %v656 = vsub.f32 0.0, %v640
  %v657 = vsub.f32 0.0, %v641
  %v658 = vsub.f32 0.0, %v642
  %v659 = vsub.f32 0.0, %v643
  %v660 = vsub.f32 0.0, %v644
  %v661 = vsub.f32 0.0, %v645
  %v662 = vsub.f32 0.0, %v646
  %v663 = vmul.f32 %v647, 1.442695
  %v664 = vpow.pop %v663
  %v665 = vmul.f32 %v648, 1.442695
  %v666 = vpow.pop %v665
  %v667 = vmul.f32 %v649, 1.442695
  %v668 = vpow.pop %v667
  %v669 = vmul.f32 %v650, 1.442695
  %v670 = vpow.pop %v669
  %v671 = vmul.f32 %v651, 1.442695
  %v672 = vpow.pop %v671
  %v673 = vmul.f32 %v652, 1.442695
  %v674 = vpow.pop %v673
  %v675 = vmul.f32 %v653, 1.442695
  %v676 = vpow.pop %v675
  %v677 = vmul.f32 %v654, 1.442695
  %v678 = vpow.pop %v677
  %v679 = vmul.f32 %v655, 1.442695
  %v680 = vpow.pop %v679
  %v681 = vmul.f32 %v656, 1.442695
  %v682 = vpow.pop %v681
  %v683 = vmul.f32 %v657, 1.442695
  %v684 = vpow.pop %v683
  %v685 = vmul.f32 %v658, 1.442695
  %v686 = vpow.pop %v685
  %v687 = vmul.f32 %v659, 1.442695
  %v688 = vpow.pop %v687
  %v689 = vmul.f32 %v660, 1.442695
  %v690 = vpow.pop %v689
  %v691 = vmul.f32 %v661, 1.442695
  %v692 = vpow.pop %v691
  %v693 = vmul.f32 %v662, 1.442695
  %v694 = vpow.pop %v693
  %v695 = vadd.f32 %v664, 1.0
  %v696 = vlog2.pop %v695
  %v697 = vmul.f32 %v696, 0.6931472
  %v698 = vmul.f32 -0.5, %v664
  %v699 = vadd.f32 %v698, 1.0
  %v700 = vmul.f32 %v699, %v664
  %v701 = vand.u32 2147483647, %v664
  %vm702 = vcmp.lt.f32.partialorder %v701, 0.0004427343
  %v703 = vsel %vm702, %v700, %v697
  %v704 = vadd.f32 %v666, 1.0
  %v705 = vlog2.pop %v704
  %v706 = vmul.f32 %v705, 0.6931472
  %v707 = vmul.f32 -0.5, %v666
  %v708 = vadd.f32 %v707, 1.0
  %v709 = vmul.f32 %v708, %v666
  %v710 = vand.u32 2147483647, %v666
  %vm711 = vcmp.lt.f32.partialorder %v710, 0.0004427343
  %v712 = vsel %vm711, %v709, %v706
  %v713 = vadd.f32 %v668, 1.0
  %v714 = vlog2.pop %v713
  %v715 = vmul.f32 %v714, 0.6931472
  %v716 = vmul.f32 -0.5, %v668
  %v717 = vadd.f32 %v716, 1.0
  %v718 = vmul.f32 %v717, %v668
  %v719 = vand.u32 2147483647, %v668
  %vm720 = vcmp.lt.f32.partialorder %v719, 0.0004427343
  %v721 = vsel %vm720, %v718, %v715
  %v722 = vadd.f32 %v670, 1.0
  %v723 = vlog2.pop %v722
  %v724 = vmul.f32 %v723, 0.6931472
  %v725 = vmul.f32 -0.5, %v670
  %v726 = vadd.f32 %v725, 1.0
  %v727 = vmul.f32 %v726, %v670
  %v728 = vand.u32 2147483647, %v670
  %vm729 = vcmp.lt.f32.partialorder %v728, 0.0004427343
  %v730 = vsel %vm729, %v727, %v724
  %v731 = vadd.f32 %v672, 1.0
  %v732 = vlog2.pop %v731
  %v733 = vmul.f32 %v732, 0.6931472
  %v734 = vmul.f32 -0.5, %v672
  %v735 = vadd.f32 %v734, 1.0
  %v736 = vmul.f32 %v735, %v672
  %v737 = vand.u32 2147483647, %v672
  %vm738 = vcmp.lt.f32.partialorder %v737, 0.0004427343
  %v739 = vsel %vm738, %v736, %v733
  %v740 = vadd.f32 %v674, 1.0
  %v741 = vlog2.pop %v740
  %v742 = vmul.f32 %v741, 0.6931472
  %v743 = vmul.f32 -0.5, %v674
  %v744 = vadd.f32 %v743, 1.0
  %v745 = vmul.f32 %v744, %v674
  %v746 = vand.u32 2147483647, %v674
  %vm747 = vcmp.lt.f32.partialorder %v746, 0.0004427343
  %v748 = vsel %vm747, %v745, %v742
  %v749 = vadd.f32 %v676, 1.0
  %v750 = vlog2.pop %v749
  %v751 = vmul.f32 %v750, 0.6931472
  %v752 = vmul.f32 -0.5, %v676
  %v753 = vadd.f32 %v752, 1.0
  %v754 = vmul.f32 %v753, %v676
  %v755 = vand.u32 2147483647, %v676
  %vm756 = vcmp.lt.f32.partialorder %v755, 0.0004427343
  %v757 = vsel %vm756, %v754, %v751
  %v758 = vadd.f32 %v678, 1.0
  %v759 = vlog2.pop %v758
  %v760 = vmul.f32 %v759, 0.6931472
  %v761 = vmul.f32 -0.5, %v678
  %v762 = vadd.f32 %v761, 1.0
  %v763 = vmul.f32 %v762, %v678
  %v764 = vand.u32 2147483647, %v678
  %vm765 = vcmp.lt.f32.partialorder %v764, 0.0004427343
  %v766 = vsel %vm765, %v763, %v760
  %v767 = vadd.f32 %v680, 1.0
  %v768 = vlog2.pop %v767
  %v769 = vmul.f32 %v768, 0.6931472
  %v770 = vmul.f32 -0.5, %v680
  %v771 = vadd.f32 %v770, 1.0
  %v772 = vmul.f32 %v771, %v680
  %v773 = vand.u32 2147483647, %v680
  %vm774 = vcmp.lt.f32.partialorder %v773, 0.0004427343
  %v775 = vsel %vm774, %v772, %v769
  %v776 = vadd.f32 %v682, 1.0
  %v777 = vlog2.pop %v776
  %v778 = vmul.f32 %v777, 0.6931472
  %v779 = vmul.f32 -0.5, %v682
  %v780 = vadd.f32 %v779, 1.0
  %v781 = vmul.f32 %v780, %v682
  %v782 = vand.u32 2147483647, %v682
  %vm783 = vcmp.lt.f32.partialorder %v782, 0.0004427343
  %v784 = vsel %vm783, %v781, %v778
  %v785 = vadd.f32 %v684, 1.0
  %v786 = vlog2.pop %v785
  %v787 = vmul.f32 %v786, 0.6931472
  %v788 = vmul.f32 -0.5, %v684
  %v789 = vadd.f32 %v788, 1.0
  %v790 = vmul.f32 %v789, %v684
  %v791 = vand.u32 2147483647, %v684
  %vm792 = vcmp.lt.f32.partialorder %v791, 0.0004427343
  %v793 = vsel %vm792, %v790, %v787
  %v794 = vadd.f32 %v686, 1.0
  %v795 = vlog2.pop %v794
  %v796 = vmul.f32 %v795, 0.6931472
  %v797 = vmul.f32 -0.5, %v686
  %v798 = vadd.f32 %v797, 1.0
  %v799 = vmul.f32 %v798, %v686
  %v800 = vand.u32 2147483647, %v686
  %vm801 = vcmp.lt.f32.partialorder %v800, 0.0004427343
  %v802 = vsel %vm801, %v799, %v796
  %v803 = vadd.f32 %v688, 1.0
  %v804 = vlog2.pop %v803
  %v805 = vmul.f32 %v804, 0.6931472
  %v806 = vmul.f32 -0.5, %v688
  %v807 = vadd.f32 %v806, 1.0
  %v808 = vmul.f32 %v807, %v688
  %v809 = vand.u32 2147483647, %v688
  %vm810 = vcmp.lt.f32.partialorder %v809, 0.0004427343
  %v811 = vsel %vm810, %v808, %v805
  %v812 = vadd.f32 %v690, 1.0
  %v813 = vlog2.pop %v812
  %v814 = vmul.f32 %v813, 0.6931472
  %v815 = vmul.f32 -0.5, %v690
  %v816 = vadd.f32 %v815, 1.0
  %v817 = vmul.f32 %v816, %v690
  %v818 = vand.u32 2147483647, %v690
  %vm819 = vcmp.lt.f32.partialorder %v818, 0.0004427343
  %v820 = vsel %vm819, %v817, %v814
  %v821 = vadd.f32 %v692, 1.0
  %v822 = vlog2.pop %v821
  %v823 = vmul.f32 %v822, 0.6931472
  %v824 = vmul.f32 -0.5, %v692
  %v825 = vadd.f32 %v824, 1.0
  %v826 = vmul.f32 %v825, %v692
  %v827 = vand.u32 2147483647, %v692
  %vm828 = vcmp.lt.f32.partialorder %v827, 0.0004427343
  %v829 = vsel %vm828, %v826, %v823
  %v830 = vadd.f32 %v694, 1.0
  %v831 = vlog2.pop %v830
  %v832 = vmul.f32 %v831, 0.6931472
  %v833 = vmul.f32 -0.5, %v694
  %v834 = vadd.f32 %v833, 1.0
  %v835 = vmul.f32 %v834, %v694
  %v836 = vand.u32 2147483647, %v694
  %vm837 = vcmp.lt.f32.partialorder %v836, 0.0004427343
  %v838 = vsel %vm837, %v835, %v832
  %v839 = vadd.f32 %v583, %v703
  %v840 = vadd.f32 %v584, %v712
  %v841 = vadd.f32 %v585, %v721
  %v842 = vadd.f32 %v586, %v730
  %v843 = vadd.f32 %v587, %v739
  %v844 = vadd.f32 %v588, %v748
  %v845 = vadd.f32 %v589, %v757
  %v846 = vadd.f32 %v590, %v766
  %v847 = vadd.f32 %v591, %v775
  %v848 = vadd.f32 %v592, %v784
  %v849 = vadd.f32 %v593, %v793
  %v850 = vadd.f32 %v594, %v802
  %v851 = vadd.f32 %v595, %v811
  %v852 = vadd.f32 %v596, %v820
  %v853 = vadd.f32 %v597, %v829
  %v854 = vadd.f32 %v598, %v838
  %v855 = vsel %vm599, %v615, %v839
  %v856 = vsel %vm600, %v616, %v840
  %v857 = vsel %vm601, %v617, %v841
  %v858 = vsel %vm602, %v618, %v842
  %v859 = vsel %vm603, %v619, %v843
  %v860 = vsel %vm604, %v620, %v844
  %v861 = vsel %vm605, %v621, %v845
  %v862 = vsel %vm606, %v622, %v846
  %v863 = vsel %vm607, %v623, %v847
  %v864 = vsel %vm608, %v624, %v848
  %v865 = vsel %vm609, %v625, %v849
  %v866 = vsel %vm610, %v626, %v850
  %v867 = vsel %vm611, %v627, %v851
  %v868 = vsel %vm612, %v628, %v852
  %v869 = vsel %vm613, %v629, %v853
  %v870 = vsel %vm614, %v630, %v854
  %v871 = vld [vmem:[%s7] sm:$0xff]
  %v872 = vld [vmem:[%s7 + $0x8] sm:$0xff]
  %v873 = vld [vmem:[%s7 + $0x10] sm:$0xff]
  %v874 = vld [vmem:[%s7 + $0x18] sm:$0xff]
  %v875 = vld [vmem:[%s7 + $0x20] sm:$0xff]
  %v876 = vld [vmem:[%s7 + $0x28] sm:$0xff]
  %v877 = vld [vmem:[%s7 + $0x30] sm:$0xff]
  %v878 = vld [vmem:[%s7 + $0x38] sm:$0xff]
  %v879 = vld [vmem:[%s8] sm:$0x1]
  %v881 = vperm.slane %v879, 0
  %vm883 = vcmask 523264
  %v885 = vsel %vm883, %v855, 0
  %v888 = vsel %vm883, %v856, 0
  %v891 = vsel %vm883, %v857, 0
  %v894 = vsel %vm883, %v858, 0
  %v897 = vsel %vm883, %v859, 0
  %v900 = vsel %vm883, %v860, 0
  %v903 = vsel %vm883, %v861, 0
  %v906 = vsel %vm883, %v862, 0
  %v909 = vsel %vm883, %v863, 0
  %v912 = vsel %vm883, %v864, 0
  %v915 = vsel %vm883, %v865, 0
  %v918 = vsel %vm883, %v866, 0
  %v921 = vsel %vm883, %v867, 0
  %v924 = vsel %vm883, %v868, 0
  %v927 = vsel %vm883, %v869, 0
  %v930 = vsel %vm883, %v870, 0
  %932 = vmatpush.msra.mxu0 0.0
  %933 = vmatpush.msra.mxu0 0.0
  %934 = vmatpush.msra.mxu0 0.0
  %935 = vmatpush.msra.mxu0 0.0
  %936 = vmatpush.msra.mxu0 0.0
  %937 = vmatpush.msra.mxu0 0.0
  %938 = vmatpush.msra.mxu0 0.0
  %939 = vmatpush.msra.mxu0 0.0
  %940 = vmatpush.msra.mxu0 %v878
  %941 = vmatpush.msra.mxu0 %v877
  %942 = vmatpush.msra.mxu0 %v876
  %943 = vmatpush.msra.mxu0 %v875
  %944 = vmatpush.msra.mxu0 %v874
  %945 = vmatpush.msra.mxu0 %v873
  %946 = vmatpush.msra.mxu0 %v872
  %947 = vmatpush.msra.mxu0 %v871
  %948 = vmatmul.f32.gmra.mxu0 %v885
  %v949 = vpop.f32.mrf.mxu0
  %v950 = vadd.f32 %v881, %v949
  %951 = vmatmul.f32.gmra.mxu0 %v888
  %v952 = vpop.f32.mrf.mxu0
  %v953 = vadd.f32 %v881, %v952
  %954 = vmatmul.f32.gmra.mxu0 %v891
  %v955 = vpop.f32.mrf.mxu0
  %v956 = vadd.f32 %v881, %v955
  %957 = vmatmul.f32.gmra.mxu0 %v894
  %v958 = vpop.f32.mrf.mxu0
  %v959 = vadd.f32 %v881, %v958
  %960 = vmatmul.f32.gmra.mxu0 %v897
  %v961 = vpop.f32.mrf.mxu0
  %v962 = vadd.f32 %v881, %v961
  %963 = vmatmul.f32.gmra.mxu0 %v900
  %v964 = vpop.f32.mrf.mxu0
  %v965 = vadd.f32 %v881, %v964
  %966 = vmatmul.f32.gmra.mxu0 %v903
  %v967 = vpop.f32.mrf.mxu0
  %v968 = vadd.f32 %v881, %v967
  %969 = vmatmul.f32.gmra.mxu0 %v906
  %v970 = vpop.f32.mrf.mxu0
  %v971 = vadd.f32 %v881, %v970
  %972 = vmatmul.f32.gmra.mxu0 %v909
  %v973 = vpop.f32.mrf.mxu0
  %v974 = vadd.f32 %v881, %v973
  %975 = vmatmul.f32.gmra.mxu0 %v912
  %v976 = vpop.f32.mrf.mxu0
  %v977 = vadd.f32 %v881, %v976
  %978 = vmatmul.f32.gmra.mxu0 %v915
  %v979 = vpop.f32.mrf.mxu0
  %v980 = vadd.f32 %v881, %v979
  %981 = vmatmul.f32.gmra.mxu0 %v918
  %v982 = vpop.f32.mrf.mxu0
  %v983 = vadd.f32 %v881, %v982
  %984 = vmatmul.f32.gmra.mxu0 %v921
  %v985 = vpop.f32.mrf.mxu0
  %v986 = vadd.f32 %v881, %v985
  %987 = vmatmul.f32.gmra.mxu0 %v924
  %v988 = vpop.f32.mrf.mxu0
  %v989 = vadd.f32 %v881, %v988
  %990 = vmatmul.f32.gmra.mxu0 %v927
  %v991 = vpop.f32.mrf.mxu0
  %v992 = vadd.f32 %v881, %v991
  %993 = vmatmul.f32.gmra.mxu0 %v930
  %v994 = vpop.f32.mrf.mxu0
  %v995 = vadd.f32 %v881, %v994
  %996 = vdwg.mxu0
  %v997 = vxor.u32 %v950, 2147483648
  %v998 = vxor.u32 %v953, 2147483648
  %v999 = vxor.u32 %v956, 2147483648
  %v1000 = vxor.u32 %v959, 2147483648
  %v1001 = vxor.u32 %v962, 2147483648
  %v1002 = vxor.u32 %v965, 2147483648
  %v1003 = vxor.u32 %v968, 2147483648
  %v1004 = vxor.u32 %v971, 2147483648
  %v1005 = vxor.u32 %v974, 2147483648
  %v1006 = vxor.u32 %v977, 2147483648
  %v1007 = vxor.u32 %v980, 2147483648
  %v1008 = vxor.u32 %v983, 2147483648
  %v1009 = vxor.u32 %v986, 2147483648
  %v1010 = vxor.u32 %v989, 2147483648
  %v1011 = vxor.u32 %v992, 2147483648
  %v1012 = vxor.u32 %v995, 2147483648
  %v1013 = vmul.f32 %v997, 1.442695
  %v1014 = vpow.pop %v1013
  %v1015 = vmul.f32 %v998, 1.442695
  %v1016 = vpow.pop %v1015
  %v1017 = vmul.f32 %v999, 1.442695
  %v1018 = vpow.pop %v1017
  %v1019 = vmul.f32 %v1000, 1.442695
  %v1020 = vpow.pop %v1019
  %v1021 = vmul.f32 %v1001, 1.442695
  %v1022 = vpow.pop %v1021
  %v1023 = vmul.f32 %v1002, 1.442695
  %v1024 = vpow.pop %v1023
  %v1025 = vmul.f32 %v1003, 1.442695
  %v1026 = vpow.pop %v1025
  %v1027 = vmul.f32 %v1004, 1.442695
  %v1028 = vpow.pop %v1027
  %v1029 = vmul.f32 %v1005, 1.442695
  %v1030 = vpow.pop %v1029
  %v1031 = vmul.f32 %v1006, 1.442695
  %v1032 = vpow.pop %v1031
  %v1033 = vmul.f32 %v1007, 1.442695
  %v1034 = vpow.pop %v1033
  %v1035 = vmul.f32 %v1008, 1.442695
  %v1036 = vpow.pop %v1035
  %v1037 = vmul.f32 %v1009, 1.442695
  %v1038 = vpow.pop %v1037
  %v1039 = vmul.f32 %v1010, 1.442695
  %v1040 = vpow.pop %v1039
  %v1041 = vmul.f32 %v1011, 1.442695
  %v1042 = vpow.pop %v1041
  %v1043 = vmul.f32 %v1012, 1.442695
  %v1044 = vpow.pop %v1043
  %v1045 = vadd.f32 %v1014, 1.0
  %v1046 = vadd.f32 %v1016, 1.0
  %v1047 = vadd.f32 %v1018, 1.0
  %v1048 = vadd.f32 %v1020, 1.0
  %v1049 = vadd.f32 %v1022, 1.0
  %v1050 = vadd.f32 %v1024, 1.0
  %v1051 = vadd.f32 %v1026, 1.0
  %v1052 = vadd.f32 %v1028, 1.0
  %v1053 = vadd.f32 %v1030, 1.0
  %v1054 = vadd.f32 %v1032, 1.0
  %v1055 = vadd.f32 %v1034, 1.0
  %v1056 = vadd.f32 %v1036, 1.0
  %v1057 = vadd.f32 %v1038, 1.0
  %v1058 = vadd.f32 %v1040, 1.0
  %v1059 = vadd.f32 %v1042, 1.0
  %v1060 = vadd.f32 %v1044, 1.0
  %v1061 = vrcp.pop %v1045
  %v1062 = vmul.f32 %v1045, %v1061
  %v1063 = vsub.f32 1.0, %v1062
  %v1064 = vmul.f32 %v1061, %v1063
  %v1065 = vadd.f32 %v1061, %v1064
  %vm1066 = vweird.f32 %v1045
  %vm1067 = vweird.f32 %v1061
  %vm1068 = vmor %vm1066, %vm1067
  %v1069 = vsel %vm1068, %v1061, %v1065
  %v1070 = vand.u32 2147483647, %v1045
  %vm1071 = vcmp.eq.f32.partialorder %v1070, 8.507059e+37
  %v1072 = vand.u32 %v1045, 2147483648
  %v1073 = vor.u32 1.1754944e-38, %v1072
  %v1074 = vsel %vm1071, %v1073, %v1069
  %v1075 = vmul.f32 1.0, %v1074
  %v1076 = vrcp.pop %v1046
  %v1077 = vmul.f32 %v1046, %v1076
  %v1078 = vsub.f32 1.0, %v1077
  %v1079 = vmul.f32 %v1076, %v1078
  %v1080 = vadd.f32 %v1076, %v1079
  %vm1081 = vweird.f32 %v1046
  %vm1082 = vweird.f32 %v1076
  %vm1083 = vmor %vm1081, %vm1082
  %v1084 = vsel %vm1083, %v1076, %v1080
  %v1085 = vand.u32 2147483647, %v1046
  %vm1086 = vcmp.eq.f32.partialorder %v1085, 8.507059e+37
  %v1087 = vand.u32 %v1046, 2147483648
  %v1088 = vor.u32 1.1754944e-38, %v1087
  %v1089 = vsel %vm1086, %v1088, %v1084
  %v1090 = vmul.f32 1.0, %v1089
  %v1091 = vrcp.pop %v1047
  %v1092 = vmul.f32 %v1047, %v1091
  %v1093 = vsub.f32 1.0, %v1092
  %v1094 = vmul.f32 %v1091, %v1093
  %v1095 = vadd.f32 %v1091, %v1094
  %vm1096 = vweird.f32 %v1047
  %vm1097 = vweird.f32 %v1091
  %vm1098 = vmor %vm1096, %vm1097
  %v1099 = vsel %vm1098, %v1091, %v1095
  %v1100 = vand.u32 2147483647, %v1047
  %vm1101 = vcmp.eq.f32.partialorder %v1100, 8.507059e+37
  %v1102 = vand.u32 %v1047, 2147483648
  %v1103 = vor.u32 1.1754944e-38, %v1102
  %v1104 = vsel %vm1101, %v1103, %v1099
  %v1105 = vmul.f32 1.0, %v1104
  %v1106 = vrcp.pop %v1048
  %v1107 = vmul.f32 %v1048, %v1106
  %v1108 = vsub.f32 1.0, %v1107
  %v1109 = vmul.f32 %v1106, %v1108
  %v1110 = vadd.f32 %v1106, %v1109
  %vm1111 = vweird.f32 %v1048
  %vm1112 = vweird.f32 %v1106
  %vm1113 = vmor %vm1111, %vm1112
  %v1114 = vsel %vm1113, %v1106, %v1110
  %v1115 = vand.u32 2147483647, %v1048
  %vm1116 = vcmp.eq.f32.partialorder %v1115, 8.507059e+37
  %v1117 = vand.u32 %v1048, 2147483648
  %v1118 = vor.u32 1.1754944e-38, %v1117
  %v1119 = vsel %vm1116, %v1118, %v1114
  %v1120 = vmul.f32 1.0, %v1119
  %v1121 = vrcp.pop %v1049
  %v1122 = vmul.f32 %v1049, %v1121
  %v1123 = vsub.f32 1.0, %v1122
  %v1124 = vmul.f32 %v1121, %v1123
  %v1125 = vadd.f32 %v1121, %v1124
  %vm1126 = vweird.f32 %v1049
  %vm1127 = vweird.f32 %v1121
  %vm1128 = vmor %vm1126, %vm1127
  %v1129 = vsel %vm1128, %v1121, %v1125
  %v1130 = vand.u32 2147483647, %v1049
  %vm1131 = vcmp.eq.f32.partialorder %v1130, 8.507059e+37
  %v1132 = vand.u32 %v1049, 2147483648
  %v1133 = vor.u32 1.1754944e-38, %v1132
  %v1134 = vsel %vm1131, %v1133, %v1129
  %v1135 = vmul.f32 1.0, %v1134
  %v1136 = vrcp.pop %v1050
  %v1137 = vmul.f32 %v1050, %v1136
  %v1138 = vsub.f32 1.0, %v1137
  %v1139 = vmul.f32 %v1136, %v1138
  %v1140 = vadd.f32 %v1136, %v1139
  %vm1141 = vweird.f32 %v1050
  %vm1142 = vweird.f32 %v1136
  %vm1143 = vmor %vm1141, %vm1142
  %v1144 = vsel %vm1143, %v1136, %v1140
  %v1145 = vand.u32 2147483647, %v1050
  %vm1146 = vcmp.eq.f32.partialorder %v1145, 8.507059e+37
  %v1147 = vand.u32 %v1050, 2147483648
  %v1148 = vor.u32 1.1754944e-38, %v1147
  %v1149 = vsel %vm1146, %v1148, %v1144
  %v1150 = vmul.f32 1.0, %v1149
  %v1151 = vrcp.pop %v1051
  %v1152 = vmul.f32 %v1051, %v1151
  %v1153 = vsub.f32 1.0, %v1152
  %v1154 = vmul.f32 %v1151, %v1153
  %v1155 = vadd.f32 %v1151, %v1154
  %vm1156 = vweird.f32 %v1051
  %vm1157 = vweird.f32 %v1151
  %vm1158 = vmor %vm1156, %vm1157
  %v1159 = vsel %vm1158, %v1151, %v1155
  %v1160 = vand.u32 2147483647, %v1051
  %vm1161 = vcmp.eq.f32.partialorder %v1160, 8.507059e+37
  %v1162 = vand.u32 %v1051, 2147483648
  %v1163 = vor.u32 1.1754944e-38, %v1162
  %v1164 = vsel %vm1161, %v1163, %v1159
  %v1165 = vmul.f32 1.0, %v1164
  %v1166 = vrcp.pop %v1052
  %v1167 = vmul.f32 %v1052, %v1166
  %v1168 = vsub.f32 1.0, %v1167
  %v1169 = vmul.f32 %v1166, %v1168
  %v1170 = vadd.f32 %v1166, %v1169
  %vm1171 = vweird.f32 %v1052
  %vm1172 = vweird.f32 %v1166
  %vm1173 = vmor %vm1171, %vm1172
  %v1174 = vsel %vm1173, %v1166, %v1170
  %v1175 = vand.u32 2147483647, %v1052
  %vm1176 = vcmp.eq.f32.partialorder %v1175, 8.507059e+37
  %v1177 = vand.u32 %v1052, 2147483648
  %v1178 = vor.u32 1.1754944e-38, %v1177
  %v1179 = vsel %vm1176, %v1178, %v1174
  %v1180 = vmul.f32 1.0, %v1179
  %v1181 = vrcp.pop %v1053
  %v1182 = vmul.f32 %v1053, %v1181
  %v1183 = vsub.f32 1.0, %v1182
  %v1184 = vmul.f32 %v1181, %v1183
  %v1185 = vadd.f32 %v1181, %v1184
  %vm1186 = vweird.f32 %v1053
  %vm1187 = vweird.f32 %v1181
  %vm1188 = vmor %vm1186, %vm1187
  %v1189 = vsel %vm1188, %v1181, %v1185
  %v1190 = vand.u32 2147483647, %v1053
  %vm1191 = vcmp.eq.f32.partialorder %v1190, 8.507059e+37
  %v1192 = vand.u32 %v1053, 2147483648
  %v1193 = vor.u32 1.1754944e-38, %v1192
  %v1194 = vsel %vm1191, %v1193, %v1189
  %v1195 = vmul.f32 1.0, %v1194
  %v1196 = vrcp.pop %v1054
  %v1197 = vmul.f32 %v1054, %v1196
  %v1198 = vsub.f32 1.0, %v1197
  %v1199 = vmul.f32 %v1196, %v1198
  %v1200 = vadd.f32 %v1196, %v1199
  %vm1201 = vweird.f32 %v1054
  %vm1202 = vweird.f32 %v1196
  %vm1203 = vmor %vm1201, %vm1202
  %v1204 = vsel %vm1203, %v1196, %v1200
  %v1205 = vand.u32 2147483647, %v1054
  %vm1206 = vcmp.eq.f32.partialorder %v1205, 8.507059e+37
  %v1207 = vand.u32 %v1054, 2147483648
  %v1208 = vor.u32 1.1754944e-38, %v1207
  %v1209 = vsel %vm1206, %v1208, %v1204
  %v1210 = vmul.f32 1.0, %v1209
  %v1211 = vrcp.pop %v1055
  %v1212 = vmul.f32 %v1055, %v1211
  %v1213 = vsub.f32 1.0, %v1212
  %v1214 = vmul.f32 %v1211, %v1213
  %v1215 = vadd.f32 %v1211, %v1214
  %vm1216 = vweird.f32 %v1055
  %vm1217 = vweird.f32 %v1211
  %vm1218 = vmor %vm1216, %vm1217
  %v1219 = vsel %vm1218, %v1211, %v1215
  %v1220 = vand.u32 2147483647, %v1055
  %vm1221 = vcmp.eq.f32.partialorder %v1220, 8.507059e+37
  %v1222 = vand.u32 %v1055, 2147483648
  %v1223 = vor.u32 1.1754944e-38, %v1222
  %v1224 = vsel %vm1221, %v1223, %v1219
  %v1225 = vmul.f32 1.0, %v1224
  %v1226 = vrcp.pop %v1056
  %v1227 = vmul.f32 %v1056, %v1226
  %v1228 = vsub.f32 1.0, %v1227
  %v1229 = vmul.f32 %v1226, %v1228
  %v1230 = vadd.f32 %v1226, %v1229
  %vm1231 = vweird.f32 %v1056
  %vm1232 = vweird.f32 %v1226
  %vm1233 = vmor %vm1231, %vm1232
  %v1234 = vsel %vm1233, %v1226, %v1230
  %v1235 = vand.u32 2147483647, %v1056
  %vm1236 = vcmp.eq.f32.partialorder %v1235, 8.507059e+37
  %v1237 = vand.u32 %v1056, 2147483648
  %v1238 = vor.u32 1.1754944e-38, %v1237
  %v1239 = vsel %vm1236, %v1238, %v1234
  %v1240 = vmul.f32 1.0, %v1239
  %v1241 = vrcp.pop %v1057
  %v1242 = vmul.f32 %v1057, %v1241
  %v1243 = vsub.f32 1.0, %v1242
  %v1244 = vmul.f32 %v1241, %v1243
  %v1245 = vadd.f32 %v1241, %v1244
  %vm1246 = vweird.f32 %v1057
  %vm1247 = vweird.f32 %v1241
  %vm1248 = vmor %vm1246, %vm1247
  %v1249 = vsel %vm1248, %v1241, %v1245
  %v1250 = vand.u32 2147483647, %v1057
  %vm1251 = vcmp.eq.f32.partialorder %v1250, 8.507059e+37
  %v1252 = vand.u32 %v1057, 2147483648
  %v1253 = vor.u32 1.1754944e-38, %v1252
  %v1254 = vsel %vm1251, %v1253, %v1249
  %v1255 = vmul.f32 1.0, %v1254
  %v1256 = vrcp.pop %v1058
  %v1257 = vmul.f32 %v1058, %v1256
  %v1258 = vsub.f32 1.0, %v1257
  %v1259 = vmul.f32 %v1256, %v1258
  %v1260 = vadd.f32 %v1256, %v1259
  %vm1261 = vweird.f32 %v1058
  %vm1262 = vweird.f32 %v1256
  %vm1263 = vmor %vm1261, %vm1262
  %v1264 = vsel %vm1263, %v1256, %v1260
  %v1265 = vand.u32 2147483647, %v1058
  %vm1266 = vcmp.eq.f32.partialorder %v1265, 8.507059e+37
  %v1267 = vand.u32 %v1058, 2147483648
  %v1268 = vor.u32 1.1754944e-38, %v1267
  %v1269 = vsel %vm1266, %v1268, %v1264
  %v1270 = vmul.f32 1.0, %v1269
  %v1271 = vrcp.pop %v1059
  %v1272 = vmul.f32 %v1059, %v1271
  %v1273 = vsub.f32 1.0, %v1272
  %v1274 = vmul.f32 %v1271, %v1273
  %v1275 = vadd.f32 %v1271, %v1274
  %vm1276 = vweird.f32 %v1059
  %vm1277 = vweird.f32 %v1271
  %vm1278 = vmor %vm1276, %vm1277
  %v1279 = vsel %vm1278, %v1271, %v1275
  %v1280 = vand.u32 2147483647, %v1059
  %vm1281 = vcmp.eq.f32.partialorder %v1280, 8.507059e+37
  %v1282 = vand.u32 %v1059, 2147483648
  %v1283 = vor.u32 1.1754944e-38, %v1282
  %v1284 = vsel %vm1281, %v1283, %v1279
  %v1285 = vmul.f32 1.0, %v1284
  %v1286 = vrcp.pop %v1060
  %v1287 = vmul.f32 %v1060, %v1286
  %v1288 = vsub.f32 1.0, %v1287
  %v1289 = vmul.f32 %v1286, %v1288
  %v1290 = vadd.f32 %v1286, %v1289
  %vm1291 = vweird.f32 %v1060
  %vm1292 = vweird.f32 %v1286
  %vm1293 = vmor %vm1291, %vm1292
  %v1294 = vsel %vm1293, %v1286, %v1290
  %v1295 = vand.u32 2147483647, %v1060
  %vm1296 = vcmp.eq.f32.partialorder %v1295, 8.507059e+37
  %v1297 = vand.u32 %v1060, 2147483648
  %v1298 = vor.u32 1.1754944e-38, %v1297
  %v1299 = vsel %vm1296, %v1298, %v1294
  %v1300 = vmul.f32 1.0, %v1299
  %v1301 = vmul.f32 %v1075, 1.002
  %v1302 = vmul.f32 %v1090, 1.002
  %v1303 = vmul.f32 %v1105, 1.002
  %v1304 = vmul.f32 %v1120, 1.002
  %v1305 = vmul.f32 %v1135, 1.002
  %v1306 = vmul.f32 %v1150, 1.002
  %v1307 = vmul.f32 %v1165, 1.002
  %v1308 = vmul.f32 %v1180, 1.002
  %v1309 = vmul.f32 %v1195, 1.002
  %v1310 = vmul.f32 %v1210, 1.002
  %v1311 = vmul.f32 %v1225, 1.002
  %v1312 = vmul.f32 %v1240, 1.002
  %v1313 = vmul.f32 %v1255, 1.002
  %v1314 = vmul.f32 %v1270, 1.002
  %v1315 = vmul.f32 %v1285, 1.002
  %v1316 = vmul.f32 %v1300, 1.002
  %v1317 = vsub.f32 %v1301, 0.001
  %v1318 = vsub.f32 %v1302, 0.001
  %v1319 = vsub.f32 %v1303, 0.001
  %v1320 = vsub.f32 %v1304, 0.001
  %v1321 = vsub.f32 %v1305, 0.001
  %v1322 = vsub.f32 %v1306, 0.001
  %v1323 = vsub.f32 %v1307, 0.001
  %v1324 = vsub.f32 %v1308, 0.001
  %v1325 = vsub.f32 %v1309, 0.001
  %v1326 = vsub.f32 %v1310, 0.001
  %v1327 = vsub.f32 %v1311, 0.001
  %v1328 = vsub.f32 %v1312, 0.001
  %v1329 = vsub.f32 %v1313, 0.001
  %v1330 = vsub.f32 %v1314, 0.001
  %v1331 = vsub.f32 %v1315, 0.001
  %v1332 = vsub.f32 %v1316, 0.001
  %v1333 = vlaneseq
  %v1334 = vand.u32 %v1333, 127
  %vm1335 = vcmp.eq.s32.totalorder %v1334, 0
  %v1336 = vsel %vm1335, %v950, %v1317
  %v1337 = vsel %vm1335, %v953, %v1318
  %v1338 = vsel %vm1335, %v956, %v1319
  %v1339 = vsel %vm1335, %v959, %v1320
  %v1340 = vsel %vm1335, %v962, %v1321
  %v1341 = vsel %vm1335, %v965, %v1322
  %v1342 = vsel %vm1335, %v968, %v1323
  %v1343 = vsel %vm1335, %v971, %v1324
  %v1344 = vsel %vm1335, %v974, %v1325
  %v1345 = vsel %vm1335, %v977, %v1326
  %v1346 = vsel %vm1335, %v980, %v1327
  %v1347 = vsel %vm1335, %v983, %v1328
  %v1348 = vsel %vm1335, %v986, %v1329
  %v1349 = vsel %vm1335, %v989, %v1330
  %v1350 = vsel %vm1335, %v992, %v1331
  %v1351 = vsel %vm1335, %v995, %v1332
  %vm1352 = vcmask 31744
  %1353 = vst.msk [vmem:[%s9] sm:$0xff] %vm1352, %v1336
  %1354 = vst.msk [vmem:[%s9 + $0x8] sm:$0xff] %vm1352, %v1337
  %1355 = vst.msk [vmem:[%s9 + $0x10] sm:$0xff] %vm1352, %v1338
  %1356 = vst.msk [vmem:[%s9 + $0x18] sm:$0xff] %vm1352, %v1339
  %1357 = vst.msk [vmem:[%s9 + $0x20] sm:$0xff] %vm1352, %v1340
  %1358 = vst.msk [vmem:[%s9 + $0x28] sm:$0xff] %vm1352, %v1341
  %1359 = vst.msk [vmem:[%s9 + $0x30] sm:$0xff] %vm1352, %v1342
  %1360 = vst.msk [vmem:[%s9 + $0x38] sm:$0xff] %vm1352, %v1343
  %1361 = vst.msk [vmem:[%s9 + $0x40] sm:$0xff] %vm1352, %v1344
  %1362 = vst.msk [vmem:[%s9 + $0x48] sm:$0xff] %vm1352, %v1345
  %1363 = vst.msk [vmem:[%s9 + $0x50] sm:$0xff] %vm1352, %v1346
  %1364 = vst.msk [vmem:[%s9 + $0x58] sm:$0xff] %vm1352, %v1347
  %1365 = vst.msk [vmem:[%s9 + $0x60] sm:$0xff] %vm1352, %v1348
  %1366 = vst.msk [vmem:[%s9 + $0x68] sm:$0xff] %vm1352, %v1349
  %1367 = vst.msk [vmem:[%s9 + $0x70] sm:$0xff] %vm1352, %v1350
  %1368 = vst.msk [vmem:[%s9 + $0x78] sm:$0xff] %vm1352, %v1351
  // Predicated region
  $region38: #{tpu_custom_call.1} parent=0 // pred_check
    _
  $region39: #{tpu_custom_call.1} parent=0 // pred_check_branch
    %1370 = sbr.rel (0) target = $region41
  $region40: #{tpu_custom_call.1} parent=0 // pred_region
    _
  $region41: #{tpu_custom_call.1} parent=0 // pred_fallthru
    _
  // Predicated region
  $region42: #{tpu_custom_call.1} parent=0 // pred_check
    _
  $region43: #{tpu_custom_call.1} parent=0 // pred_check_branch
    %1372 = sbr.rel (0) target = $region45
  $region44: #{tpu_custom_call.1} parent=0 // pred_region
    _
  $region45: #{tpu_custom_call.1} parent=0 // pred_fallthru
    _

</llo_original>
